<compile_context>
chip_gen: v7x
topology: tpu7x:2x2x1
jax: 0.10.0
libtpu: 0.0.40
codegen_flags: <defaults>
</compile_context>

<pallas_src>
import jax
import jax.numpy as jnp
import numpy as np
from jax.experimental import pallas as pl
from jax.experimental.pallas import tpu as pltpu

N_SEGMENT = 3
N_DIV = 8
GRID_HW = 14                    # hard-coded 14x14 patch grid in the PyTorch module
P_TOKENS = 1 + GRID_HW * GRID_HW


def _round_up(x, m):
    return (x + m - 1) // m * m


def _bayer_masks(pp, p, c, fold):
    """Host-side (Pp, C) int32 selector tables: 1 where token/channel takes next / prev frame.
    Rows >= p are padding and row 0 is the cls token -> pass-through (both masks 0)."""
    pidx = np.arange(pp)
    h = (pidx - 1) // GRID_HW
    w = (pidx - 1) % GRID_HW
    is_patch = (pidx >= 1) & (pidx < p)
    even_even = (h % 2 == 0) & (w % 2 == 0) & is_patch
    odd_odd = (h % 2 == 1) & (w % 2 == 1) & is_patch
    ch = np.arange(c) < fold
    take_next = (even_even[:, None] & ch[None, :]).astype(np.int32)
    take_prev = (odd_odd[:, None] & ch[None, :]).astype(np.int32)
    return take_next, take_prev


def _bayer_shift_kernel(x_ref, tn_ref, tp_ref, w_ref, b_ref, o_ref, scr_ref):
    # x_ref / o_ref / scr_ref: (Bn, T, Pp, C); tn/tp: (Pp, C) int32 tables (VMEM-resident);
    # w: (C, C) bf16; b: (1, C).
    bn, t_len, pp, c = x_ref.shape

    # --- Shift stage: bayer select per frame, vectorized over the batch dim (no bi unroll).
    # Whole T axis is resident, so neighbor frames are just other static slices of the block;
    # edge clamping (first/last frame keep their own value) falls out of min/max on static t.
    for t in range(t_len):                       # T == 3: short static unroll
        take_next = tn_ref[...] != 0             # recomputed per frame (VPU has slack)
        take_prev = tp_ref[...] != 0             #  -> no long-lived predicate vregs
        cur = x_ref[:, t, :, :]                                  # (Bn, Pp, C)
        nxt = x_ref[:, min(t + 1, t_len - 1), :, :]
        prv = x_ref[:, max(t - 1, 0), :, :]
        scr_ref[:, t, :, :] = jnp.where(take_next, nxt,
                                        jnp.where(take_prev, prv, cur))

    # --- Fused Linear stage: ONE large MXU matmul over all frames (M = Bn*T*Pp),
    # bf16 operands, f32 accumulation; bias added once to the (M, C) result.
    m = bn * t_len * pp
    lhs = scr_ref[...].reshape(m, c).astype(jnp.bfloat16)
    y = jnp.dot(lhs, w_ref[...], preferred_element_type=jnp.float32)
    y = y + b_ref[...].astype(jnp.float32)
    o_ref[...] = y.reshape(bn, t_len, pp, c).astype(o_ref.dtype)


def _choose_block_batches(nb, per_n_bytes, budget_bytes=24 << 20, max_bn=8):
    """Largest divisor Bn of nb whose estimated VMEM footprint (double-buffered in+out blocks,
    scratch, matmul temporaries ~= 9x the slab) fits the budget, preferring >= 2 grid steps
    so both v7x TensorCores get work."""
    best = 1
    for bn in range(1, min(nb, max_bn) + 1):
        if nb % bn:
            continue
        vmem = 9 * per_n_bytes * bn
        if vmem > budget_bytes:
            break
        if nb // bn >= 2 or nb == 1:
            best = bn
    return best


def bayer_shift(x, w, b, n_segment=N_SEGMENT, *, block_batches=None):
    """x: (NT, P, C); w: (C, C) as (in, out); b: (C,) or (1, C)."""
    nt, p, c = x.shape
    assert nt % n_segment == 0 and p == P_TOKENS and c % N_DIV == 0 and c % 128 == 0
    nb = nt // n_segment
    T = n_segment
    pp = _round_up(p, 8)                 # 197 -> 200: keeps blocks/reshapes (8,128)-tile aligned

    x4 = jnp.pad(x.reshape(nb, T, p, c), ((0, 0), (0, 0), (0, pp - p), (0, 0)))

    fold = c // N_DIV
    tn_np, tp_np = _bayer_masks(pp, p, c, fold)
    tn_mask = jnp.asarray(tn_np)
    tp_mask = jnp.asarray(tp_np)
    w_bf = jnp.asarray(w).astype(jnp.bfloat16)          # bf16 MXU operand, cast once
    b2 = jnp.asarray(b).reshape(1, c).astype(jnp.float32)

    per_n_bytes = T * pp * c * jnp.dtype(x.dtype).itemsize
    bn = block_batches if block_batches is not None else _choose_block_batches(nb, per_n_bytes)
    assert nb % bn == 0

    grid = (nb // bn,)
    x_spec = pl.BlockSpec((bn, T, pp, c), lambda n: (n, 0, 0, 0))
    m_spec = pl.BlockSpec((pp, c), lambda n: (0, 0))    # same block every step -> VMEM-resident
    w_spec = pl.BlockSpec((c, c), lambda n: (0, 0))
    b_spec = pl.BlockSpec((1, c), lambda n: (0, 0))
    out_spec = pl.BlockSpec((bn, T, pp, c), lambda n: (n, 0, 0, 0))

    out = pl.pallas_call(
        _bayer_shift_kernel,
        out_shape=jax.ShapeDtypeStruct((nb, T, pp, c), x.dtype),
        grid=grid,
        in_specs=[x_spec, m_spec, m_spec, w_spec, b_spec],
        out_specs=out_spec,
        scratch_shapes=[pltpu.VMEM((bn, T, pp, c), jnp.float32)],
        compiler_params=pltpu.CompilerParams(
            dimension_semantics=("parallel",),
            vmem_limit_bytes=32 * 1024 * 1024),
    )(x4, tn_mask, tp_mask, w_bf, b2)

    # TODO(synk): for tiny nb (online inference, nb<=2 on v7x) add a second "parallel" grid
    # axis over token chunks for TensorCore balance; not needed for the shapes tested here.
    return out[:, :, :p, :].reshape(nt, p, c)


def shift_reference(x, n_segment=N_SEGMENT, fold_div=N_DIV):
    # Pure-JAX functional transcription of BayerShift.shift (intended, non-aliased semantics).
    nt, p, c = x.shape
    nb = nt // n_segment
    x4 = x.reshape(nb, n_segment, p, c)
    fold = c // fold_div
    feat = x4[:, :, 1:, :].reshape(nb, n_segment, GRID_HW, GRID_HW, c)
    out = feat
    out = out.at[:, :-1, 0::2, 0::2, :fold].set(feat[:, 1:, 0::2, 0::2, :fold])
    out = out.at[:, 1:, 1::2, 1::2, :fold].set(feat[:, :-1, 1::2, 1::2, :fold])
    out = out.reshape(nb, n_segment, GRID_HW * GRID_HW, c)
    out = jnp.concatenate([x4[:, :, :1, :], out], axis=2)
    return out.reshape(nt, p, c)


# TODO(synk): the surrounding DeiT backbone (patch_embed conv, transformer blocks, LayerNorm,
# pretrained checkpoint loading) is out of scope here; only the BayerShift + its Linear is kerneled.

if __name__ == "__main__":
    key = jax.random.PRNGKey(0)
    kx, kw, kb = jax.random.split(key, 3)

    n_batch, c = 2, 128                           # small, lane-dense channel width
    nt = n_batch * N_SEGMENT                      # 6
    x = jax.random.normal(kx, (nt, P_TOKENS, c), dtype=jnp.float32)

    # deterministic "net" parameters (Linear c -> c), stored as (in, out)
    w = jax.random.normal(kw, (c, c), dtype=jnp.float32) * (1.0 / np.sqrt(c))
    b = jax.random.normal(kb, (1, c), dtype=jnp.float32) * 0.01

    out = jax.block_until_ready(bayer_shift(x, w, b))

    ref = shift_reference(x) @ w + b
    # tolerance loosened vs the f32 reference because the kernel uses bf16 MXU operands
    np.testing.assert_allclose(np.asarray(out), np.asarray(ref), rtol=2e-2, atol=3e-2)

    print("KERNEL_OK")
</pallas_src>

<mosaic_0001>
module attributes {stable_mosaic.version = 11 : i64} {
  func.func @_bayer_shift_kernel(%arg0: i32, %arg1: memref<1x3x200x128xf32, #tpu.memory_space<vmem>>, %arg2: memref<200x128xi32, #tpu.memory_space<vmem>>, %arg3: memref<200x128xi32, #tpu.memory_space<vmem>>, %arg4: memref<128x128xbf16, #tpu.memory_space<vmem>>, %arg5: memref<1x128xf32, #tpu.memory_space<vmem>>, %arg6: memref<1x3x200x128xf32, #tpu.memory_space<vmem>>, %arg7: memref<1x3x200x128xf32, #tpu.memory_space<vmem>>) attributes {dimension_semantics = [#tpu.dimension_semantics<parallel>], iteration_bounds = array<i64: 2>, scalar_prefetch = 0 : i64, scratch_operands = 1 : i64, tpu.core_type = #tpu.core_type<tc>, window_params = [{transform_indices = @transform_0, window_bounds = array<i64: 1, 3, 200, 128>}, {pipeline_mode = #tpu.pipeline_mode<synchronous>, transform_indices = @transform_1, window_bounds = array<i64: 200, 128>}, {pipeline_mode = #tpu.pipeline_mode<synchronous>, transform_indices = @transform_2, window_bounds = array<i64: 200, 128>}, {pipeline_mode = #tpu.pipeline_mode<synchronous>, transform_indices = @transform_3, window_bounds = array<i64: 128, 128>}, {pipeline_mode = #tpu.pipeline_mode<synchronous>, transform_indices = @transform_4, window_bounds = array<i64: 1, 128>}, {transform_indices = @transform_5, window_bounds = array<i64: 1, 3, 200, 128>}]} {
    %c0 = arith.constant 0 : index
    %c0_0 = arith.constant 0 : index
    %0 = vector.load %arg2[%c0, %c0_0] : memref<200x128xi32, #tpu.memory_space<vmem>>, vector<200x128xi32>
    %c0_i32 = arith.constant 0 : i32
    %1 = vector.broadcast %c0_i32 : i32 to vector<200x128xi32>
    %2 = arith.cmpi ne, %0, %1 : vector<200x128xi32>
    %c0_1 = arith.constant 0 : index
    %c0_2 = arith.constant 0 : index
    %3 = vector.load %arg3[%c0_1, %c0_2] : memref<200x128xi32, #tpu.memory_space<vmem>>, vector<200x128xi32>
    %c0_i32_3 = arith.constant 0 : i32
    %4 = vector.broadcast %c0_i32_3 : i32 to vector<200x128xi32>
    %5 = arith.cmpi ne, %3, %4 : vector<200x128xi32>
    %c0_4 = arith.constant 0 : index
    %c0_5 = arith.constant 0 : index
    %c0_6 = arith.constant 0 : index
    %c0_7 = arith.constant 0 : index
    %6 = vector.load %arg1[%c0_4, %c0_5, %c0_6, %c0_7] : memref<1x3x200x128xf32, #tpu.memory_space<vmem>>, vector<1x1x200x128xf32>
    %7 = vector.shape_cast %6 : vector<1x1x200x128xf32> to vector<1x200x128xf32>
    %c0_8 = arith.constant 0 : index
    %c1 = arith.constant 1 : index
    %c0_9 = arith.constant 0 : index
    %c0_10 = arith.constant 0 : index
    %8 = vector.load %arg1[%c0_8, %c1, %c0_9, %c0_10] : memref<1x3x200x128xf32, #tpu.memory_space<vmem>>, vector<1x1x200x128xf32>
    %9 = vector.shape_cast %8 : vector<1x1x200x128xf32> to vector<1x200x128xf32>
    %c0_11 = arith.constant 0 : index
    %c0_12 = arith.constant 0 : index
    %c0_13 = arith.constant 0 : index
    %c0_14 = arith.constant 0 : index
    %10 = vector.load %arg1[%c0_11, %c0_12, %c0_13, %c0_14] : memref<1x3x200x128xf32, #tpu.memory_space<vmem>>, vector<1x1x200x128xf32>
    %11 = vector.shape_cast %10 : vector<1x1x200x128xf32> to vector<1x200x128xf32>
    %12 = vector.shape_cast %5 : vector<200x128xi1> to vector<1x200x128xi1>
    %13 = arith.select %12, %11, %7 : vector<1x200x128xi1>, vector<1x200x128xf32>
    %14 = vector.shape_cast %2 : vector<200x128xi1> to vector<1x200x128xi1>
    %15 = arith.select %14, %9, %13 : vector<1x200x128xi1>, vector<1x200x128xf32>
    %c0_15 = arith.constant 0 : index
    %c0_16 = arith.constant 0 : index
    %c0_17 = arith.constant 0 : index
    %c0_18 = arith.constant 0 : index
    %16 = vector.load %arg7[%c0_15, %c0_16, %c0_17, %c0_18] : memref<1x3x200x128xf32, #tpu.memory_space<vmem>>, vector<1x1x200x128xf32>
    %17 = vector.shape_cast %16 : vector<1x1x200x128xf32> to vector<1x200x128xf32>
    %18 = vector.shape_cast %15 : vector<1x200x128xf32> to vector<1x1x200x128xf32>
    tpu.vector_store %arg7[%c0_15, %c0_16, %c0_17, %c0_18], %18 {strides = array<i32>} : memref<1x3x200x128xf32, #tpu.memory_space<vmem>>, vector<1x1x200x128xf32>,
    %c0_19 = arith.constant 0 : index
    %c0_20 = arith.constant 0 : index
    %19 = vector.load %arg2[%c0_19, %c0_20] : memref<200x128xi32, #tpu.memory_space<vmem>>, vector<200x128xi32>
    %c0_i32_21 = arith.constant 0 : i32
    %20 = vector.broadcast %c0_i32_21 : i32 to vector<200x128xi32>
    %21 = arith.cmpi ne, %19, %20 : vector<200x128xi32>
    %c0_22 = arith.constant 0 : index
    %c0_23 = arith.constant 0 : index
    %22 = vector.load %arg3[%c0_22, %c0_23] : memref<200x128xi32, #tpu.memory_space<vmem>>, vector<200x128xi32>
    %c0_i32_24 = arith.constant 0 : i32
    %23 = vector.broadcast %c0_i32_24 : i32 to vector<200x128xi32>
    %24 = arith.cmpi ne, %22, %23 : vector<200x128xi32>
    %c0_25 = arith.constant 0 : index
    %c1_26 = arith.constant 1 : index
    %c0_27 = arith.constant 0 : index
    %c0_28 = arith.constant 0 : index
    %25 = vector.load %arg1[%c0_25, %c1_26, %c0_27, %c0_28] : memref<1x3x200x128xf32, #tpu.memory_space<vmem>>, vector<1x1x200x128xf32>
    %26 = vector.shape_cast %25 : vector<1x1x200x128xf32> to vector<1x200x128xf32>
    %c0_29 = arith.constant 0 : index
    %c2 = arith.constant 2 : index
    %c0_30 = arith.constant 0 : index
    %c0_31 = arith.constant 0 : index
    %27 = vector.load %arg1[%c0_29, %c2, %c0_30, %c0_31] : memref<1x3x200x128xf32, #tpu.memory_space<vmem>>, vector<1x1x200x128xf32>
    %28 = vector.shape_cast %27 : vector<1x1x200x128xf32> to vector<1x200x128xf32>
    %c0_32 = arith.constant 0 : index
    %c0_33 = arith.constant 0 : index
    %c0_34 = arith.constant 0 : index
    %c0_35 = arith.constant 0 : index
    %29 = vector.load %arg1[%c0_32, %c0_33, %c0_34, %c0_35] : memref<1x3x200x128xf32, #tpu.memory_space<vmem>>, vector<1x1x200x128xf32>
    %30 = vector.shape_cast %29 : vector<1x1x200x128xf32> to vector<1x200x128xf32>
    %31 = vector.shape_cast %24 : vector<200x128xi1> to vector<1x200x128xi1>
    %32 = arith.select %31, %30, %26 : vector<1x200x128xi1>, vector<1x200x128xf32>
    %33 = vector.shape_cast %21 : vector<200x128xi1> to vector<1x200x128xi1>
    %34 = arith.select %33, %28, %32 : vector<1x200x128xi1>, vector<1x200x128xf32>
    %c0_36 = arith.constant 0 : index
    %c1_37 = arith.constant 1 : index
    %c0_38 = arith.constant 0 : index
    %c0_39 = arith.constant 0 : index
    %35 = vector.load %arg7[%c0_36, %c1_37, %c0_38, %c0_39] : memref<1x3x200x128xf32, #tpu.memory_space<vmem>>, vector<1x1x200x128xf32>
    %36 = vector.shape_cast %35 : vector<1x1x200x128xf32> to vector<1x200x128xf32>
    %37 = vector.shape_cast %34 : vector<1x200x128xf32> to vector<1x1x200x128xf32>
    tpu.vector_store %arg7[%c0_36, %c1_37, %c0_38, %c0_39], %37 {strides = array<i32>} : memref<1x3x200x128xf32, #tpu.memory_space<vmem>>, vector<1x1x200x128xf32>,
    %c0_40 = arith.constant 0 : index
    %c0_41 = arith.constant 0 : index
    %38 = vector.load %arg2[%c0_40, %c0_41] : memref<200x128xi32, #tpu.memory_space<vmem>>, vector<200x128xi32>
    %c0_i32_42 = arith.constant 0 : i32
    %39 = vector.broadcast %c0_i32_42 : i32 to vector<200x128xi32>
    %40 = arith.cmpi ne, %38, %39 : vector<200x128xi32>
    %c0_43 = arith.constant 0 : index
    %c0_44 = arith.constant 0 : index
    %41 = vector.load %arg3[%c0_43, %c0_44] : memref<200x128xi32, #tpu.memory_space<vmem>>, vector<200x128xi32>
    %c0_i32_45 = arith.constant 0 : i32
    %42 = vector.broadcast %c0_i32_45 : i32 to vector<200x128xi32>
    %43 = arith.cmpi ne, %41, %42 : vector<200x128xi32>
    %c0_46 = arith.constant 0 : index
    %c2_47 = arith.constant 2 : index
    %c0_48 = arith.constant 0 : index
    %c0_49 = arith.constant 0 : index
    %44 = vector.load %arg1[%c0_46, %c2_47, %c0_48, %c0_49] : memref<1x3x200x128xf32, #tpu.memory_space<vmem>>, vector<1x1x200x128xf32>
    %45 = vector.shape_cast %44 : vector<1x1x200x128xf32> to vector<1x200x128xf32>
    %c0_50 = arith.constant 0 : index
    %c2_51 = arith.constant 2 : index
    %c0_52 = arith.constant 0 : index
    %c0_53 = arith.constant 0 : index
    %46 = vector.load %arg1[%c0_50, %c2_51, %c0_52, %c0_53] : memref<1x3x200x128xf32, #tpu.memory_space<vmem>>, vector<1x1x200x128xf32>
    %47 = vector.shape_cast %46 : vector<1x1x200x128xf32> to vector<1x200x128xf32>
    %c0_54 = arith.constant 0 : index
    %c1_55 = arith.constant 1 : index
    %c0_56 = arith.constant 0 : index
    %c0_57 = arith.constant 0 : index
    %48 = vector.load %arg1[%c0_54, %c1_55, %c0_56, %c0_57] : memref<1x3x200x128xf32, #tpu.memory_space<vmem>>, vector<1x1x200x128xf32>
    %49 = vector.shape_cast %48 : vector<1x1x200x128xf32> to vector<1x200x128xf32>
    %50 = vector.shape_cast %43 : vector<200x128xi1> to vector<1x200x128xi1>
    %51 = arith.select %50, %49, %45 : vector<1x200x128xi1>, vector<1x200x128xf32>
    %52 = vector.shape_cast %40 : vector<200x128xi1> to vector<1x200x128xi1>
    %53 = arith.select %52, %47, %51 : vector<1x200x128xi1>, vector<1x200x128xf32>
    %c0_58 = arith.constant 0 : index
    %c2_59 = arith.constant 2 : index
    %c0_60 = arith.constant 0 : index
    %c0_61 = arith.constant 0 : index
    %54 = vector.load %arg7[%c0_58, %c2_59, %c0_60, %c0_61] : memref<1x3x200x128xf32, #tpu.memory_space<vmem>>, vector<1x1x200x128xf32>
    %55 = vector.shape_cast %54 : vector<1x1x200x128xf32> to vector<1x200x128xf32>
    %56 = vector.shape_cast %53 : vector<1x200x128xf32> to vector<1x1x200x128xf32>
    tpu.vector_store %arg7[%c0_58, %c2_59, %c0_60, %c0_61], %56 {strides = array<i32>} : memref<1x3x200x128xf32, #tpu.memory_space<vmem>>, vector<1x1x200x128xf32>,
    %c0_62 = arith.constant 0 : index
    %c0_63 = arith.constant 0 : index
    %c0_64 = arith.constant 0 : index
    %c0_65 = arith.constant 0 : index
    %57 = vector.load %arg7[%c0_62, %c0_63, %c0_64, %c0_65] : memref<1x3x200x128xf32, #tpu.memory_space<vmem>>, vector<1x3x200x128xf32>
    %58 = vector.shape_cast %57 : vector<1x3x200x128xf32> to vector<600x128xf32>
    %59 = arith.truncf %58 : vector<600x128xf32> to vector<600x128xbf16>
    %c0_66 = arith.constant 0 : index
    %c0_67 = arith.constant 0 : index
    %60 = vector.load %arg4[%c0_66, %c0_67] : memref<128x128xbf16, #tpu.memory_space<vmem>>, vector<128x128xbf16>
    %cst = arith.constant dense<0.000000e+00> : vector<600x128xf32>
    %61 = tpu.matmul %59, %60, %cst {dimension_numbers = #tpu.dot_dimension_numbers<[1], [0], [0], [1], [0, 0, 1, 1], [], []>} : vector<600x128xbf16>, vector<128x128xbf16>, vector<600x128xf32> -> vector<600x128xf32>
    %c0_68 = arith.constant 0 : index
    %c0_69 = arith.constant 0 : index
    %62 = vector.load %arg5[%c0_68, %c0_69] : memref<1x128xf32, #tpu.memory_space<vmem>>, vector<1x128xf32>
    %63 = vector.broadcast %62 : vector<1x128xf32> to vector<600x128xf32>
    %64 = arith.addf %61, %63 : vector<600x128xf32>
    %65 = vector.shape_cast %64 : vector<600x128xf32> to vector<1x3x200x128xf32>
    %c0_70 = arith.constant 0 : index
    %c0_71 = arith.constant 0 : index
    %c0_72 = arith.constant 0 : index
    %c0_73 = arith.constant 0 : index
    %66 = vector.load %arg6[%c0_70, %c0_71, %c0_72, %c0_73] : memref<1x3x200x128xf32, #tpu.memory_space<vmem>>, vector<1x3x200x128xf32>
    tpu.vector_store %arg6[%c0_70, %c0_71, %c0_72, %c0_73], %65 {strides = array<i32>} : memref<1x3x200x128xf32, #tpu.memory_space<vmem>>, vector<1x3x200x128xf32>,
    return
  }
  func.func @transform_0(%arg0: i32) -> (i32, i32, i32, i32) {
    %c0_i32 = arith.constant 0 : i32
    %c0_i32_0 = arith.constant 0 : i32
    %c0_i32_1 = arith.constant 0 : i32
    %c0_i32_2 = arith.constant 0 : i32
    return %arg0, %c0_i32, %c0_i32_0, %c0_i32_1 : i32, i32, i32, i32
  }
  func.func @transform_1(%arg0: i32) -> (i32, i32) {
    %c0_i32 = arith.constant 0 : i32
    %c0_i32_0 = arith.constant 0 : i32
    %c0_i32_1 = arith.constant 0 : i32
    return %c0_i32, %c0_i32_0 : i32, i32
  }
  func.func @transform_2(%arg0: i32) -> (i32, i32) {
    %c0_i32 = arith.constant 0 : i32
    %c0_i32_0 = arith.constant 0 : i32
    %c0_i32_1 = arith.constant 0 : i32
    return %c0_i32, %c0_i32_0 : i32, i32
  }
  func.func @transform_3(%arg0: i32) -> (i32, i32) {
    %c0_i32 = arith.constant 0 : i32
    %c0_i32_0 = arith.constant 0 : i32
    %c0_i32_1 = arith.constant 0 : i32
    return %c0_i32, %c0_i32_0 : i32, i32
  }
  func.func @transform_4(%arg0: i32) -> (i32, i32) {
    %c0_i32 = arith.constant 0 : i32
    %c0_i32_0 = arith.constant 0 : i32
    %c0_i32_1 = arith.constant 0 : i32
    return %c0_i32, %c0_i32_0 : i32, i32
  }
  func.func @transform_5(%arg0: i32) -> (i32, i32, i32, i32) {
    %c0_i32 = arith.constant 0 : i32
    %c0_i32_0 = arith.constant 0 : i32
    %c0_i32_1 = arith.constant 0 : i32
    %c0_i32_2 = arith.constant 0 : i32
    return %arg0, %c0_i32, %c0_i32_0, %c0_i32_1 : i32, i32, i32, i32
  }
}

</mosaic_0001>

<llo_original>
// kernel: tpu_custom_call.1
$region0: #{tpu_custom_call.1}
  #allocation0 [shape = 'u32[]', space=smem, size = 0x4, offset = 0x4, fixed_abs, tag = 'smem constant byte address 0x4 - core index']
  #allocation1 [shape = 'u32[144,128]{1,0:T(1,128)}', space=vmem, size = 0x12000, scoped, tag = 'internal scratch']
  #allocation2 [shape = 'f32[1,3,200,128]{3,2,1,0:T(8,128)}', space=vmem, size = 0x4b000, scoped, tag = 'scratch operand']
  %s0 = inlined_call_operand.hbm [shape: f32[2,3,200,128], index: 0, kind: input, shape index: {}]
  %s1 = inlined_call_operand.hbm [shape: s32[200,128], index: 1, kind: input, shape index: {}]
  %s2 = inlined_call_operand.hbm [shape: s32[200,128], index: 2, kind: input, shape index: {}]
  %s3 = inlined_call_operand.hbm [shape: bf16[128,128], index: 3, kind: input, shape index: {}]
  %s4 = inlined_call_operand.vmem [shape: f32[1,128], index: 4, kind: input, shape index: {}]
  %s5 = inlined_call_operand.hbm [shape: f32[2,3,200,128], index: 5, kind: output, shape index: {}]
  %s6 = sld [smem:[#allocation0]]
  $region69: #{tpu_custom_call.1} parent=0
    _
  %s8 = ssub.s32 1, %s6
  %s9 = scalar_select 0, %s8, %s6
  $region1: #{tpu_custom_call.1} parent=0
    #allocation3 [shape = 'u8[614400]{0}', space=vmem, size = 0x96000, scoped, tag = 'input window, operand 0']
    #allocation4 [shape = 's32[2]{0}', space=sflag, size = 0x8, scoped, tag = 'scoped memory for tpu_custom_call.1']
    #allocation5 [shape = 's32[2]{0}', space=sflag, size = 0x8, scoped, tag = 'scoped memory for tpu_custom_call.1']
    #allocation6 [shape = 'u8[102400]{0}', space=vmem, size = 0x19000, scoped, tag = 'input window, operand 1, single buffered']
    #allocation7 [shape = 's32[1]{0}', space=sflag, size = 0x4, scoped, tag = 'scoped memory for tpu_custom_call.1']
    #allocation8 [shape = 'u8[102400]{0}', space=vmem, size = 0x19000, scoped, tag = 'input window, operand 2, single buffered']
    #allocation9 [shape = 'u8[32768]{0}', space=vmem, size = 0x8000, scoped, tag = 'input window, operand 3, single buffered']
    #allocation10 [shape = 's32[1]{0}', space=sflag, size = 0x4, scoped, tag = 'scoped memory for tpu_custom_call.1']
    #allocation11 [shape = 'u8[614400]{0}', space=vmem, size = 0x96000, scoped, tag = 'output window, operand 0']
    %10 = vsyncpa [#allocation4], 0
    %s11 = scalar_lea.sflag [#allocation4], 1
    %12 = vsyncpa %s11, 0
    %13 = vsyncpa [#allocation7], 0
    %14 = vsyncpa [#allocation10], 0
    %15 = vsyncpa [#allocation5], 0
    %s16 = scalar_lea.sflag [#allocation5], 1
    %17 = vsyncpa %s16, 0
    loop: start=0, step=1, limit=4
    $region2: #{tpu_custom_call.1} parent=1 // loop_pre_header
      _
    $region3: #{tpu_custom_call.1} parent=1 // loop_header
      %s19 = sphi 0, %s23
      %p20 = scmp.ge.s32.totalorder %s19, 4
      %s29 = sphi 0, %s31
      %s32 = sphi 0, %s29
      %s33 = sphi 0, %s32
      %s49 = sphi 0, %s33
      %s53 = sphi 0, %s53
      %s55 = sphi 0, %s53
      %s56 = sphi 0, %s55
      %s70 = sphi 0, %s56
      %s74 = sphi 0, %s74
      %s76 = sphi 0, %s74
      %s77 = sphi 0, %s76
      %s91 = sphi 0, %s77
      %s95 = sphi 0, %s95
      %s97 = sphi 0, %s95
      %s98 = sphi 0, %s97
      %s112 = sphi 0, %s98
      %s116 = sphi 0, %s116
      %s118 = sphi 0, %s116
      %s119 = sphi 0, %s118
      %s133 = sphi 0, %s119
      %s139 = sphi 0, %s141
      %s142 = sphi 0, %s139
      %s143 = sphi 0, %s142
      %s159 = sphi 0, %s143
    $region4: #{tpu_custom_call.1} parent=1 // loop_header_branch
      %22 = sbr.rel (%p20) target = $region8
    $region5: #{tpu_custom_call.1} parent=1 // loop_body
      %s24 = ssub.s32 %s19, 1
      %s25 = ssub.s32 %s19, 2
      %s26 = sadd.s32 %s19, 1
      %s27 = ssub.s32 %s19, %s26
      %p28 = scmp.eq.s32.totalorder %s27, 0
      %s30 = sadd.s32 %s29, 1
      %s31 = scalar_select %p28, %s29, %s30
      %p34 = pneg %p28
      %p35 = scmp.eq.s32.totalorder %s19, 1
      %p36 = por %p34, %p35
      %p37 = scmp.ne.s32.totalorder %s29, %s32
      %p38 = scmp.eq.s32.totalorder %s19, 0
      %p39 = por %p37, %p38
      %p40 = scmp.ne.s32.totalorder %s29, %s32
      %p41 = scmp.eq.s32.totalorder %s24, 1
      %p42 = por %p40, %p41
      %p43 = scmp.ne.s32.totalorder %s32, %s33
      %p44 = scmp.eq.s32.totalorder %s24, 0
      %p45 = por %p43, %p44
      %p46 = scmp.ne.s32.totalorder %s32, %s33
      %p47 = scmp.eq.s32.totalorder %s25, 1
      %p48 = por %p46, %p47
      %p50 = scmp.ne.s32.totalorder %s33, %s49
      %p51 = scmp.eq.s32.totalorder %s25, 0
      %p52 = por %p50, %p51
      %s54 = sadd.s32 %s53, 1
      %p57 = scmp.eq.s32.totalorder %s19, 1
      %p58 = scmp.ne.s32.totalorder %s53, %s55
      %p59 = scmp.eq.s32.totalorder %s19, 0
      %p60 = por %p58, %p59
      %p61 = scmp.ne.s32.totalorder %s53, %s55
      %p62 = scmp.eq.s32.totalorder %s24, 1
      %p63 = por %p61, %p62
      %p64 = scmp.ne.s32.totalorder %s55, %s56
      %p65 = scmp.eq.s32.totalorder %s24, 0
      %p66 = por %p64, %p65
      %p67 = scmp.ne.s32.totalorder %s55, %s56
      %p68 = scmp.eq.s32.totalorder %s25, 1
      %p69 = por %p67, %p68
      %p71 = scmp.ne.s32.totalorder %s56, %s70
      %p72 = scmp.eq.s32.totalorder %s25, 0
      %p73 = por %p71, %p72
      %s75 = sadd.s32 %s74, 1
      %p78 = scmp.eq.s32.totalorder %s19, 1
      %p79 = scmp.ne.s32.totalorder %s74, %s76
      %p80 = scmp.eq.s32.totalorder %s19, 0
      %p81 = por %p79, %p80
      %p82 = scmp.ne.s32.totalorder %s74, %s76
      %p83 = scmp.eq.s32.totalorder %s24, 1
      %p84 = por %p82, %p83
      %p85 = scmp.ne.s32.totalorder %s76, %s77
      %p86 = scmp.eq.s32.totalorder %s24, 0
      %p87 = por %p85, %p86
      %p88 = scmp.ne.s32.totalorder %s76, %s77
      %p89 = scmp.eq.s32.totalorder %s25, 1
      %p90 = por %p88, %p89
      %p92 = scmp.ne.s32.totalorder %s77, %s91
      %p93 = scmp.eq.s32.totalorder %s25, 0
      %p94 = por %p92, %p93
      %s96 = sadd.s32 %s95, 1
      %p99 = scmp.eq.s32.totalorder %s19, 1
      %p100 = scmp.ne.s32.totalorder %s95, %s97
      %p101 = scmp.eq.s32.totalorder %s19, 0
      %p102 = por %p100, %p101
      %p103 = scmp.ne.s32.totalorder %s95, %s97
      %p104 = scmp.eq.s32.totalorder %s24, 1
      %p105 = por %p103, %p104
      %p106 = scmp.ne.s32.totalorder %s97, %s98
      %p107 = scmp.eq.s32.totalorder %s24, 0
      %p108 = por %p106, %p107
      %p109 = scmp.ne.s32.totalorder %s97, %s98
      %p110 = scmp.eq.s32.totalorder %s25, 1
      %p111 = por %p109, %p110
      %p113 = scmp.ne.s32.totalorder %s98, %s112
      %p114 = scmp.eq.s32.totalorder %s25, 0
      %p115 = por %p113, %p114
      %s117 = sadd.s32 %s116, 1
      %p120 = scmp.eq.s32.totalorder %s19, 1
      %p121 = scmp.ne.s32.totalorder %s116, %s118
      %p122 = scmp.eq.s32.totalorder %s19, 0
      %p123 = por %p121, %p122
      %p124 = scmp.ne.s32.totalorder %s116, %s118
      %p125 = scmp.eq.s32.totalorder %s24, 1
      %p126 = por %p124, %p125
      %p127 = scmp.ne.s32.totalorder %s118, %s119
      %p128 = scmp.eq.s32.totalorder %s24, 0
      %p129 = por %p127, %p128
      %p130 = scmp.ne.s32.totalorder %s118, %s119
      %p131 = scmp.eq.s32.totalorder %s25, 1
      %p132 = por %p130, %p131
      %p134 = scmp.ne.s32.totalorder %s119, %s133
      %p135 = scmp.eq.s32.totalorder %s25, 0
      %p136 = por %p134, %p135
      %s137 = ssub.s32 %s19, %s26
      %p138 = scmp.eq.s32.totalorder %s137, 0
      %s140 = sadd.s32 %s139, 1
      %s141 = scalar_select %p138, %s139, %s140
      %p144 = pneg %p138
      %p145 = scmp.eq.s32.totalorder %s19, 1
      %p146 = por %p144, %p145
      %p147 = scmp.ne.s32.totalorder %s139, %s142
      %p148 = scmp.eq.s32.totalorder %s19, 0
      %p149 = por %p147, %p148
      %p150 = scmp.ne.s32.totalorder %s139, %s142
      %p151 = scmp.eq.s32.totalorder %s24, 1
      %p152 = por %p150, %p151
      %p153 = scmp.ne.s32.totalorder %s142, %s143
      %p154 = scmp.eq.s32.totalorder %s24, 0
      %p155 = por %p153, %p154
      %p156 = scmp.ne.s32.totalorder %s142, %s143
      %p157 = scmp.eq.s32.totalorder %s25, 1
      %p158 = por %p156, %p157
      %p160 = scmp.ne.s32.totalorder %s143, %s159
      %p161 = scmp.eq.s32.totalorder %s25, 0
      %p162 = por %p160, %p161
      %p163 = scmp.le.s32.totalorder 1, %s19
      %p164 = scmp.lt.s32.totalorder %s19, 3
      %p165 = pnand %p163, %p164
      %p166 = pneg %p165
      // Predicated region
      $region9: #{tpu_custom_call.1} parent=5 // pred_check
        _
      $region10: #{tpu_custom_call.1} parent=5 // pred_check_branch
        %168 = sbr.rel (%p165) target = $region12
      $region11: #{tpu_custom_call.1} parent=5 // pred_region
        %s169 = ssub.s32 %s19, 1
        // Predicated region
        $region13: #{tpu_custom_call.1} parent=11 // pred_check
          %p170 = pneg %p66
        $region14: #{tpu_custom_call.1} parent=11 // pred_check_branch
          %172 = sbr.rel (%p170) target = $region16
        $region15: #{tpu_custom_call.1} parent=11 // pred_region
          %s174 = ssub.s32 3200, 3200
          %175 = vsyncadd [#allocation7], %s174
          %s176 = sshll.u32 [#allocation6], 4
          %s177 = int_to_ptr.vmem [resolvable:$true] %s176
          %182 = dma.hbm_to_vmem [thread:$0]  %s1, 3200, %s177, [#allocation7], 128, 128, 8
        $region16: #{tpu_custom_call.1} parent=11 // pred_fallthru
          _
        // Predicated region
        $region17: #{tpu_custom_call.1} parent=11 // pred_check
          %p183 = pneg %p87
        $region18: #{tpu_custom_call.1} parent=11 // pred_check_branch
          %185 = sbr.rel (%p183) target = $region20
        $region19: #{tpu_custom_call.1} parent=11 // pred_region
          %s187 = ssub.s32 3200, 3200
          %188 = vsyncadd [#allocation7], %s187
          %s189 = sshll.u32 [#allocation8], 4
          %s190 = int_to_ptr.vmem [resolvable:$true] %s189
          %195 = dma.hbm_to_vmem [thread:$0]  %s2, 3200, %s190, [#allocation7], 128, 128, 8
        $region20: #{tpu_custom_call.1} parent=11 // pred_fallthru
          _
        // Predicated region
        $region21: #{tpu_custom_call.1} parent=11 // pred_check
          %p196 = pneg %p108
        $region22: #{tpu_custom_call.1} parent=11 // pred_check_branch
          %198 = sbr.rel (%p196) target = $region24
        $region23: #{tpu_custom_call.1} parent=11 // pred_region
          %s200 = ssub.s32 1024, 1024
          %201 = vsyncadd [#allocation10], %s200
          %s202 = sshll.u32 [#allocation9], 4
          %s203 = int_to_ptr.vmem [resolvable:$true] %s202
          %208 = dma.hbm_to_vmem [thread:$0]  %s3, 1024, %s203, [#allocation10], 64, 64, 4
        $region24: #{tpu_custom_call.1} parent=11 // pred_fallthru
          _
        // Predicated region
        $region25: #{tpu_custom_call.1} parent=11 // pred_check
          %p209 = pneg %p129
        $region26: #{tpu_custom_call.1} parent=11 // pred_check_branch
          %211 = sbr.rel (%p209) target = $region28
        $region27: #{tpu_custom_call.1} parent=11 // pred_region
          _
        $region28: #{tpu_custom_call.1} parent=11 // pred_fallthru
          _
      $region12: #{tpu_custom_call.1} parent=5 // pred_fallthru
        _
      %p212 = scmp.lt.s32.totalorder %s19, 2
      // Predicated region
      $region29: #{tpu_custom_call.1} parent=5 // pred_check
        %p213 = pneg %p212
      $region30: #{tpu_custom_call.1} parent=5 // pred_check_branch
        %215 = sbr.rel (%p213) target = $region32
      $region31: #{tpu_custom_call.1} parent=5 // pred_region
        // Predicated region
        $region33: #{tpu_custom_call.1} parent=31 // pred_check
          %p216 = pneg %p39
        $region34: #{tpu_custom_call.1} parent=31 // pred_check_branch
          %218 = sbr.rel (%p216) target = $region36
        $region35: #{tpu_custom_call.1} parent=31 // pred_region
          %s219 = sand.u32 %s29, 1
          %s220 = scalar_lea.sflag [#allocation4], %s219
          %s221 = sand.u32 %s29, 1
          %s222 = smul.addr %s221, 600
          %s223 = scalar_lea.vmem [#allocation3], %s222
          %s225 = ssub.s32 9600, 9600
          %226 = vsyncadd %s220, %s225
          %s227 = smul.addr %s19, 75
          %s228 = smul.addr %s227, 128
          %s229 = scalar_lea.hbm %s0, %s228
          %s230 = sshll.u32 %s223, 4
          %s231 = int_to_ptr.vmem [resolvable:$true] %s230
          %236 = dma.hbm_to_vmem [thread:$0]  %s229, 9600, %s231, %s220, 128, 128, 8
        $region36: #{tpu_custom_call.1} parent=31 // pred_fallthru
          _
      $region32: #{tpu_custom_call.1} parent=5 // pred_fallthru
        _
      %p237 = scmp.le.s32.totalorder 1, %s19
      %p238 = scmp.lt.s32.totalorder %s19, 3
      %p239 = pnand %p237, %p238
      %p240 = pneg %p239
      // Predicated region
      $region37: #{tpu_custom_call.1} parent=5 // pred_check
        _
      $region38: #{tpu_custom_call.1} parent=5 // pred_check_branch
        %242 = sbr.rel (%p239) target = $region40
      $region39: #{tpu_custom_call.1} parent=5 // pred_region
        %s243 = ssub.s32 %s19, 1
        %s244 = sand.u32 %s32, 1
        %s245 = scalar_lea.sflag [#allocation4], %s244
        %s246 = sand.u32 %s32, 1
        %s247 = smul.addr %s246, 600
        %s248 = scalar_lea.vmem [#allocation3], %s247
        // Predicated region
        $region41: #{tpu_custom_call.1} parent=39 // pred_check
          %p249 = pneg %p45
        $region42: #{tpu_custom_call.1} parent=39 // pred_check_branch
          %251 = sbr.rel (%p249) target = $region44
        $region43: #{tpu_custom_call.1} parent=39 // pred_region
          %252 = dma.done %s245, 9600
        $region44: #{tpu_custom_call.1} parent=39 // pred_fallthru
          _
        // Predicated region
        $region45: #{tpu_custom_call.1} parent=39 // pred_check
          %p253 = pneg %p66
        $region46: #{tpu_custom_call.1} parent=39 // pred_check_branch
          %255 = sbr.rel (%p253) target = $region48
        $region47: #{tpu_custom_call.1} parent=39 // pred_region
          %256 = dma.done [#allocation7], 3200
        $region48: #{tpu_custom_call.1} parent=39 // pred_fallthru
          _
        // Predicated region
        $region49: #{tpu_custom_call.1} parent=39 // pred_check
          %p257 = pneg %p87
        $region50: #{tpu_custom_call.1} parent=39 // pred_check_branch
          %259 = sbr.rel (%p257) target = $region52
        $region51: #{tpu_custom_call.1} parent=39 // pred_region
          %260 = dma.done [#allocation7], 3200
        $region52: #{tpu_custom_call.1} parent=39 // pred_fallthru
          _
        // Predicated region
        $region53: #{tpu_custom_call.1} parent=39 // pred_check
          %p261 = pneg %p108
        $region54: #{tpu_custom_call.1} parent=39 // pred_check_branch
          %263 = sbr.rel (%p261) target = $region56
        $region55: #{tpu_custom_call.1} parent=39 // pred_region
          %264 = dma.done [#allocation10], 1024
        $region56: #{tpu_custom_call.1} parent=39 // pred_fallthru
          _
        %s265 = sand.u32 %s32, 1
        %s266 = scalar_lea.sflag [#allocation4], %s265
        %s267 = sand.u32 %s32, 1
        %s268 = smul.addr %s267, 600
        %s269 = scalar_lea.vmem [#allocation3], %s268
        %p270 = pneg %p45
        %p271 = pneg %p42
        %p272 = pneg %p66
        %p273 = pneg %p63
        %p274 = pneg %p87
        %p275 = pneg %p84
        %p276 = pneg %p108
        %p277 = pneg %p105
        %p278 = pneg %p129
        %p279 = pneg %p126
        %p280 = pneg %p155
        %p281 = pneg %p152
        %s282 = sand.u32 %s142, 1
        %s283 = scalar_lea.sflag [#allocation5], %s282
        %s284 = sand.u32 %s142, 1
        %s285 = smul.addr %s284, 600
        %s286 = scalar_lea.vmem [#allocation11], %s285
        %v288 = vld [vmem:[#allocation6] sm:$0xff]
        %v289 = vld [vmem:[#allocation6 + $0x8] sm:$0xff]
        %v290 = vld [vmem:[#allocation6 + $0x10] sm:$0xff]
        %v291 = vld [vmem:[#allocation6 + $0x18] sm:$0xff]
        %v292 = vld [vmem:[#allocation6 + $0x20] sm:$0xff]
        %v293 = vld [vmem:[#allocation6 + $0x28] sm:$0xff]
        %v294 = vld [vmem:[#allocation6 + $0x30] sm:$0xff]
        %v295 = vld [vmem:[#allocation6 + $0x38] sm:$0xff]
        %v296 = vld [vmem:[#allocation6 + $0x40] sm:$0xff]
        %v297 = vld [vmem:[#allocation6 + $0x48] sm:$0xff]
        %v298 = vld [vmem:[#allocation6 + $0x50] sm:$0xff]
        %v299 = vld [vmem:[#allocation6 + $0x58] sm:$0xff]
        %v300 = vld [vmem:[#allocation6 + $0x60] sm:$0xff]
        %v301 = vld [vmem:[#allocation6 + $0x68] sm:$0xff]
        %v302 = vld [vmem:[#allocation6 + $0x70] sm:$0xff]
        %v303 = vld [vmem:[#allocation6 + $0x78] sm:$0xff]
        %v304 = vld [vmem:[#allocation6 + $0x80] sm:$0xff]
        %v305 = vld [vmem:[#allocation6 + $0x88] sm:$0xff]
        %v306 = vld [vmem:[#allocation6 + $0x90] sm:$0xff]
        %v307 = vld [vmem:[#allocation6 + $0x98] sm:$0xff]
        %v308 = vld [vmem:[#allocation6 + $0xa0] sm:$0xff]
        %v309 = vld [vmem:[#allocation6 + $0xa8] sm:$0xff]
        %v310 = vld [vmem:[#allocation6 + $0xb0] sm:$0xff]
        %v311 = vld [vmem:[#allocation6 + $0xb8] sm:$0xff]
        %v312 = vld [vmem:[#allocation6 + $0xc0] sm:$0xff]
        %vm313 = vcmp.ne.s32.totalorder %v288, 0
        %vm314 = vcmp.ne.s32.totalorder %v289, 0
        %vm315 = vcmp.ne.s32.totalorder %v290, 0
        %vm316 = vcmp.ne.s32.totalorder %v291, 0
        %vm317 = vcmp.ne.s32.totalorder %v292, 0
        %vm318 = vcmp.ne.s32.totalorder %v293, 0
        %vm319 = vcmp.ne.s32.totalorder %v294, 0
        %vm320 = vcmp.ne.s32.totalorder %v295, 0
        %vm321 = vcmp.ne.s32.totalorder %v296, 0
        %vm322 = vcmp.ne.s32.totalorder %v297, 0
        %vm323 = vcmp.ne.s32.totalorder %v298, 0
        %vm324 = vcmp.ne.s32.totalorder %v299, 0
        %vm325 = vcmp.ne.s32.totalorder %v300, 0
        %vm326 = vcmp.ne.s32.totalorder %v301, 0
        %vm327 = vcmp.ne.s32.totalorder %v302, 0
        %vm328 = vcmp.ne.s32.totalorder %v303, 0
        %vm329 = vcmp.ne.s32.totalorder %v304, 0
        %vm330 = vcmp.ne.s32.totalorder %v305, 0
        %vm331 = vcmp.ne.s32.totalorder %v306, 0
        %vm332 = vcmp.ne.s32.totalorder %v307, 0
        %vm333 = vcmp.ne.s32.totalorder %v308, 0
        %vm334 = vcmp.ne.s32.totalorder %v309, 0
        %vm335 = vcmp.ne.s32.totalorder %v310, 0
        %vm336 = vcmp.ne.s32.totalorder %v311, 0
        %vm337 = vcmp.ne.s32.totalorder %v312, 0
        %v338 = vld [vmem:[%s248] sm:$0xff]
        %v339 = vld [vmem:[%s248 + $0x8] sm:$0xff]
        %v340 = vld [vmem:[%s248 + $0x10] sm:$0xff]
        %v341 = vld [vmem:[%s248 + $0x18] sm:$0xff]
        %v342 = vld [vmem:[%s248 + $0x20] sm:$0xff]
        %v343 = vld [vmem:[%s248 + $0x28] sm:$0xff]
        %v344 = vld [vmem:[%s248 + $0x30] sm:$0xff]
        %v345 = vld [vmem:[%s248 + $0x38] sm:$0xff]
        %v346 = vld [vmem:[%s248 + $0x40] sm:$0xff]
        %v347 = vld [vmem:[%s248 + $0x48] sm:$0xff]
        %v348 = vld [vmem:[%s248 + $0x50] sm:$0xff]
        %v349 = vld [vmem:[%s248 + $0x58] sm:$0xff]
        %v350 = vld [vmem:[%s248 + $0x60] sm:$0xff]
        %v351 = vld [vmem:[%s248 + $0x68] sm:$0xff]
        %v352 = vld [vmem:[%s248 + $0x70] sm:$0xff]
        %v353 = vld [vmem:[%s248 + $0x78] sm:$0xff]
        %v354 = vld [vmem:[%s248 + $0x80] sm:$0xff]
        %v355 = vld [vmem:[%s248 + $0x88] sm:$0xff]
        %v356 = vld [vmem:[%s248 + $0x90] sm:$0xff]
        %v357 = vld [vmem:[%s248 + $0x98] sm:$0xff]
        %v358 = vld [vmem:[%s248 + $0xa0] sm:$0xff]
        %v359 = vld [vmem:[%s248 + $0xa8] sm:$0xff]
        %v360 = vld [vmem:[%s248 + $0xb0] sm:$0xff]
        %v361 = vld [vmem:[%s248 + $0xb8] sm:$0xff]
        %v362 = vld [vmem:[%s248 + $0xc0] sm:$0xff]
        %s363 = scalar_lea.vmem %s248, 200 [#allocation3]
        %v364 = vld [vmem:[%s363] sm:$0xff]
        %v365 = vld [vmem:[%s363 + $0x8] sm:$0xff]
        %v366 = vld [vmem:[%s363 + $0x10] sm:$0xff]
        %v367 = vld [vmem:[%s363 + $0x18] sm:$0xff]
        %v368 = vld [vmem:[%s363 + $0x20] sm:$0xff]
        %v369 = vld [vmem:[%s363 + $0x28] sm:$0xff]
        %v370 = vld [vmem:[%s363 + $0x30] sm:$0xff]
        %v371 = vld [vmem:[%s363 + $0x38] sm:$0xff]
        %v372 = vld [vmem:[%s363 + $0x40] sm:$0xff]
        %v373 = vld [vmem:[%s363 + $0x48] sm:$0xff]
        %v374 = vld [vmem:[%s363 + $0x50] sm:$0xff]
        %v375 = vld [vmem:[%s363 + $0x58] sm:$0xff]
        %v376 = vld [vmem:[%s363 + $0x60] sm:$0xff]
        %v377 = vld [vmem:[%s363 + $0x68] sm:$0xff]
        %v378 = vld [vmem:[%s363 + $0x70] sm:$0xff]
        %v379 = vld [vmem:[%s363 + $0x78] sm:$0xff]
        %v380 = vld [vmem:[%s363 + $0x80] sm:$0xff]
        %v381 = vld [vmem:[%s363 + $0x88] sm:$0xff]
        %v382 = vld [vmem:[%s363 + $0x90] sm:$0xff]
        %v383 = vld [vmem:[%s363 + $0x98] sm:$0xff]
        %v384 = vld [vmem:[%s363 + $0xa0] sm:$0xff]
        %v385 = vld [vmem:[%s363 + $0xa8] sm:$0xff]
        %v386 = vld [vmem:[%s363 + $0xb0] sm:$0xff]
        %v387 = vld [vmem:[%s363 + $0xb8] sm:$0xff]
        %v388 = vld [vmem:[%s363 + $0xc0] sm:$0xff]
        %v389 = vsel %vm313, %v364, %v338
        %v390 = vsel %vm314, %v365, %v339
        %v391 = vsel %vm315, %v366, %v340
        %v392 = vsel %vm316, %v367, %v341
        %v393 = vsel %vm317, %v368, %v342
        %v394 = vsel %vm318, %v369, %v343
        %v395 = vsel %vm319, %v370, %v344
        %v396 = vsel %vm320, %v371, %v345
        %v397 = vsel %vm321, %v372, %v346
        %v398 = vsel %vm322, %v373, %v347
        %v399 = vsel %vm323, %v374, %v348
        %v400 = vsel %vm324, %v375, %v349
        %v401 = vsel %vm325, %v376, %v350
        %v402 = vsel %vm326, %v377, %v351
        %v403 = vsel %vm327, %v378, %v352
        %v404 = vsel %vm328, %v379, %v353
        %v405 = vsel %vm329, %v380, %v354
        %v406 = vsel %vm330, %v381, %v355
        %v407 = vsel %vm331, %v382, %v356
        %v408 = vsel %vm332, %v383, %v357
        %v409 = vsel %vm333, %v384, %v358
        %v410 = vsel %vm334, %v385, %v359
        %v411 = vsel %vm335, %v386, %v360
        %v412 = vsel %vm336, %v387, %v361
        %v413 = vsel %vm337, %v388, %v362
        %414 = vst [vmem:[#allocation2] sm:$0xff] %v389
        %415 = vst [vmem:[#allocation2 + $0x8] sm:$0xff] %v390
        %416 = vst [vmem:[#allocation2 + $0x10] sm:$0xff] %v391
        %417 = vst [vmem:[#allocation2 + $0x18] sm:$0xff] %v392
        %418 = vst [vmem:[#allocation2 + $0x20] sm:$0xff] %v393
        %419 = vst [vmem:[#allocation2 + $0x28] sm:$0xff] %v394
        %420 = vst [vmem:[#allocation2 + $0x30] sm:$0xff] %v395
        %421 = vst [vmem:[#allocation2 + $0x38] sm:$0xff] %v396
        %422 = vst [vmem:[#allocation2 + $0x40] sm:$0xff] %v397
        %423 = vst [vmem:[#allocation2 + $0x48] sm:$0xff] %v398
        %424 = vst [vmem:[#allocation2 + $0x50] sm:$0xff] %v399
        %425 = vst [vmem:[#allocation2 + $0x58] sm:$0xff] %v400
        %426 = vst [vmem:[#allocation2 + $0x60] sm:$0xff] %v401
        %427 = vst [vmem:[#allocation2 + $0x68] sm:$0xff] %v402
        %428 = vst [vmem:[#allocation2 + $0x70] sm:$0xff] %v403
        %429 = vst [vmem:[#allocation2 + $0x78] sm:$0xff] %v404
        %430 = vst [vmem:[#allocation2 + $0x80] sm:$0xff] %v405
        %431 = vst [vmem:[#allocation2 + $0x88] sm:$0xff] %v406
        %432 = vst [vmem:[#allocation2 + $0x90] sm:$0xff] %v407
        %433 = vst [vmem:[#allocation2 + $0x98] sm:$0xff] %v408
        %434 = vst [vmem:[#allocation2 + $0xa0] sm:$0xff] %v409
        %435 = vst [vmem:[#allocation2 + $0xa8] sm:$0xff] %v410
        %436 = vst [vmem:[#allocation2 + $0xb0] sm:$0xff] %v411
        %437 = vst [vmem:[#allocation2 + $0xb8] sm:$0xff] %v412
        %438 = vst [vmem:[#allocation2 + $0xc0] sm:$0xff] %v413
        %v439 = vld [vmem:[#allocation6] sm:$0xff]
        %v440 = vld [vmem:[#allocation6 + $0x8] sm:$0xff]
        %v441 = vld [vmem:[#allocation6 + $0x10] sm:$0xff]
        %v442 = vld [vmem:[#allocation6 + $0x18] sm:$0xff]
        %v443 = vld [vmem:[#allocation6 + $0x20] sm:$0xff]
        %v444 = vld [vmem:[#allocation6 + $0x28] sm:$0xff]
        %v445 = vld [vmem:[#allocation6 + $0x30] sm:$0xff]
        %v446 = vld [vmem:[#allocation6 + $0x38] sm:$0xff]
        %v447 = vld [vmem:[#allocation6 + $0x40] sm:$0xff]
        %v448 = vld [vmem:[#allocation6 + $0x48] sm:$0xff]
        %v449 = vld [vmem:[#allocation6 + $0x50] sm:$0xff]
        %v450 = vld [vmem:[#allocation6 + $0x58] sm:$0xff]
        %v451 = vld [vmem:[#allocation6 + $0x60] sm:$0xff]
        %v452 = vld [vmem:[#allocation6 + $0x68] sm:$0xff]
        %v453 = vld [vmem:[#allocation6 + $0x70] sm:$0xff]
        %v454 = vld [vmem:[#allocation6 + $0x78] sm:$0xff]
        %v455 = vld [vmem:[#allocation6 + $0x80] sm:$0xff]
        %v456 = vld [vmem:[#allocation6 + $0x88] sm:$0xff]
        %v457 = vld [vmem:[#allocation6 + $0x90] sm:$0xff]
        %v458 = vld [vmem:[#allocation6 + $0x98] sm:$0xff]
        %v459 = vld [vmem:[#allocation6 + $0xa0] sm:$0xff]
        %v460 = vld [vmem:[#allocation6 + $0xa8] sm:$0xff]
        %v461 = vld [vmem:[#allocation6 + $0xb0] sm:$0xff]
        %v462 = vld [vmem:[#allocation6 + $0xb8] sm:$0xff]
        %v463 = vld [vmem:[#allocation6 + $0xc0] sm:$0xff]
        %vm464 = vcmp.ne.s32.totalorder %v439, 0
        %vm465 = vcmp.ne.s32.totalorder %v440, 0
        %vm466 = vcmp.ne.s32.totalorder %v441, 0
        %vm467 = vcmp.ne.s32.totalorder %v442, 0
        %vm468 = vcmp.ne.s32.totalorder %v443, 0
        %vm469 = vcmp.ne.s32.totalorder %v444, 0
        %vm470 = vcmp.ne.s32.totalorder %v445, 0
        %vm471 = vcmp.ne.s32.totalorder %v446, 0
        %vm472 = vcmp.ne.s32.totalorder %v447, 0
        %vm473 = vcmp.ne.s32.totalorder %v448, 0
        %vm474 = vcmp.ne.s32.totalorder %v449, 0
        %vm475 = vcmp.ne.s32.totalorder %v450, 0
        %vm476 = vcmp.ne.s32.totalorder %v451, 0
        %vm477 = vcmp.ne.s32.totalorder %v452, 0
        %vm478 = vcmp.ne.s32.totalorder %v453, 0
        %vm479 = vcmp.ne.s32.totalorder %v454, 0
        %vm480 = vcmp.ne.s32.totalorder %v455, 0
        %vm481 = vcmp.ne.s32.totalorder %v456, 0
        %vm482 = vcmp.ne.s32.totalorder %v457, 0
        %vm483 = vcmp.ne.s32.totalorder %v458, 0
        %vm484 = vcmp.ne.s32.totalorder %v459, 0
        %vm485 = vcmp.ne.s32.totalorder %v460, 0
        %vm486 = vcmp.ne.s32.totalorder %v461, 0
        %vm487 = vcmp.ne.s32.totalorder %v462, 0
        %vm488 = vcmp.ne.s32.totalorder %v463, 0
        %v489 = vld [vmem:[#allocation8] sm:$0xff]
        %v490 = vld [vmem:[#allocation8 + $0x8] sm:$0xff]
        %v491 = vld [vmem:[#allocation8 + $0x10] sm:$0xff]
        %v492 = vld [vmem:[#allocation8 + $0x18] sm:$0xff]
        %v493 = vld [vmem:[#allocation8 + $0x20] sm:$0xff]
        %v494 = vld [vmem:[#allocation8 + $0x28] sm:$0xff]
        %v495 = vld [vmem:[#allocation8 + $0x30] sm:$0xff]
        %v496 = vld [vmem:[#allocation8 + $0x38] sm:$0xff]
        %v497 = vld [vmem:[#allocation8 + $0x40] sm:$0xff]
        %v498 = vld [vmem:[#allocation8 + $0x48] sm:$0xff]
        %v499 = vld [vmem:[#allocation8 + $0x50] sm:$0xff]
        %v500 = vld [vmem:[#allocation8 + $0x58] sm:$0xff]
        %v501 = vld [vmem:[#allocation8 + $0x60] sm:$0xff]
        %v502 = vld [vmem:[#allocation8 + $0x68] sm:$0xff]
        %v503 = vld [vmem:[#allocation8 + $0x70] sm:$0xff]
        %v504 = vld [vmem:[#allocation8 + $0x78] sm:$0xff]
        %v505 = vld [vmem:[#allocation8 + $0x80] sm:$0xff]
        %v506 = vld [vmem:[#allocation8 + $0x88] sm:$0xff]
        %v507 = vld [vmem:[#allocation8 + $0x90] sm:$0xff]
        %v508 = vld [vmem:[#allocation8 + $0x98] sm:$0xff]
        %v509 = vld [vmem:[#allocation8 + $0xa0] sm:$0xff]
        %v510 = vld [vmem:[#allocation8 + $0xa8] sm:$0xff]
        %v511 = vld [vmem:[#allocation8 + $0xb0] sm:$0xff]
        %v512 = vld [vmem:[#allocation8 + $0xb8] sm:$0xff]
        %v513 = vld [vmem:[#allocation8 + $0xc0] sm:$0xff]
        %vm514 = vcmp.ne.s32.totalorder %v489, 0
        %vm515 = vcmp.ne.s32.totalorder %v490, 0
        %vm516 = vcmp.ne.s32.totalorder %v491, 0
        %vm517 = vcmp.ne.s32.totalorder %v492, 0
        %vm518 = vcmp.ne.s32.totalorder %v493, 0
        %vm519 = vcmp.ne.s32.totalorder %v494, 0
        %vm520 = vcmp.ne.s32.totalorder %v495, 0
        %vm521 = vcmp.ne.s32.totalorder %v496, 0
        %vm522 = vcmp.ne.s32.totalorder %v497, 0
        %vm523 = vcmp.ne.s32.totalorder %v498, 0
        %vm524 = vcmp.ne.s32.totalorder %v499, 0
        %vm525 = vcmp.ne.s32.totalorder %v500, 0
        %vm526 = vcmp.ne.s32.totalorder %v501, 0
        %vm527 = vcmp.ne.s32.totalorder %v502, 0
        %vm528 = vcmp.ne.s32.totalorder %v503, 0
        %vm529 = vcmp.ne.s32.totalorder %v504, 0
        %vm530 = vcmp.ne.s32.totalorder %v505, 0
        %vm531 = vcmp.ne.s32.totalorder %v506, 0
        %vm532 = vcmp.ne.s32.totalorder %v507, 0
        %vm533 = vcmp.ne.s32.totalorder %v508, 0
        %vm534 = vcmp.ne.s32.totalorder %v509, 0
        %vm535 = vcmp.ne.s32.totalorder %v510, 0
        %vm536 = vcmp.ne.s32.totalorder %v511, 0
        %vm537 = vcmp.ne.s32.totalorder %v512, 0
        %vm538 = vcmp.ne.s32.totalorder %v513, 0
        %v539 = vld [vmem:[%s363] sm:$0xff]
        %v540 = vld [vmem:[%s363 + $0x8] sm:$0xff]
        %v541 = vld [vmem:[%s363 + $0x10] sm:$0xff]
        %v542 = vld [vmem:[%s363 + $0x18] sm:$0xff]
        %v543 = vld [vmem:[%s363 + $0x20] sm:$0xff]
        %v544 = vld [vmem:[%s363 + $0x28] sm:$0xff]
        %v545 = vld [vmem:[%s363 + $0x30] sm:$0xff]
        %v546 = vld [vmem:[%s363 + $0x38] sm:$0xff]
        %v547 = vld [vmem:[%s363 + $0x40] sm:$0xff]
        %v548 = vld [vmem:[%s363 + $0x48] sm:$0xff]
        %v549 = vld [vmem:[%s363 + $0x50] sm:$0xff]
        %v550 = vld [vmem:[%s363 + $0x58] sm:$0xff]
        %v551 = vld [vmem:[%s363 + $0x60] sm:$0xff]
        %v552 = vld [vmem:[%s363 + $0x68] sm:$0xff]
        %v553 = vld [vmem:[%s363 + $0x70] sm:$0xff]
        %v554 = vld [vmem:[%s363 + $0x78] sm:$0xff]
        %v555 = vld [vmem:[%s363 + $0x80] sm:$0xff]
        %v556 = vld [vmem:[%s363 + $0x88] sm:$0xff]
        %v557 = vld [vmem:[%s363 + $0x90] sm:$0xff]
        %v558 = vld [vmem:[%s363 + $0x98] sm:$0xff]
        %v559 = vld [vmem:[%s363 + $0xa0] sm:$0xff]
        %v560 = vld [vmem:[%s363 + $0xa8] sm:$0xff]
        %v561 = vld [vmem:[%s363 + $0xb0] sm:$0xff]
        %v562 = vld [vmem:[%s363 + $0xb8] sm:$0xff]
        %v563 = vld [vmem:[%s363 + $0xc0] sm:$0xff]
        %s564 = scalar_lea.vmem %s248, 400 [#allocation3]
        %v565 = vld [vmem:[%s564] sm:$0xff]
        %v566 = vld [vmem:[%s564 + $0x8] sm:$0xff]
        %v567 = vld [vmem:[%s564 + $0x10] sm:$0xff]
        %v568 = vld [vmem:[%s564 + $0x18] sm:$0xff]
        %v569 = vld [vmem:[%s564 + $0x20] sm:$0xff]
        %v570 = vld [vmem:[%s564 + $0x28] sm:$0xff]
        %v571 = vld [vmem:[%s564 + $0x30] sm:$0xff]
        %v572 = vld [vmem:[%s564 + $0x38] sm:$0xff]
        %v573 = vld [vmem:[%s564 + $0x40] sm:$0xff]
        %v574 = vld [vmem:[%s564 + $0x48] sm:$0xff]
        %v575 = vld [vmem:[%s564 + $0x50] sm:$0xff]
        %v576 = vld [vmem:[%s564 + $0x58] sm:$0xff]
        %v577 = vld [vmem:[%s564 + $0x60] sm:$0xff]
        %v578 = vld [vmem:[%s564 + $0x68] sm:$0xff]
        %v579 = vld [vmem:[%s564 + $0x70] sm:$0xff]
        %v580 = vld [vmem:[%s564 + $0x78] sm:$0xff]
        %v581 = vld [vmem:[%s564 + $0x80] sm:$0xff]
        %v582 = vld [vmem:[%s564 + $0x88] sm:$0xff]
        %v583 = vld [vmem:[%s564 + $0x90] sm:$0xff]
        %v584 = vld [vmem:[%s564 + $0x98] sm:$0xff]
        %v585 = vld [vmem:[%s564 + $0xa0] sm:$0xff]
        %v586 = vld [vmem:[%s564 + $0xa8] sm:$0xff]
        %v587 = vld [vmem:[%s564 + $0xb0] sm:$0xff]
        %v588 = vld [vmem:[%s564 + $0xb8] sm:$0xff]
        %v589 = vld [vmem:[%s564 + $0xc0] sm:$0xff]
        %v590 = vld [vmem:[%s248] sm:$0xff]
        %v591 = vld [vmem:[%s248 + $0x8] sm:$0xff]
        %v592 = vld [vmem:[%s248 + $0x10] sm:$0xff]
        %v593 = vld [vmem:[%s248 + $0x18] sm:$0xff]
        %v594 = vld [vmem:[%s248 + $0x20] sm:$0xff]
        %v595 = vld [vmem:[%s248 + $0x28] sm:$0xff]
        %v596 = vld [vmem:[%s248 + $0x30] sm:$0xff]
        %v597 = vld [vmem:[%s248 + $0x38] sm:$0xff]
        %v598 = vld [vmem:[%s248 + $0x40] sm:$0xff]
        %v599 = vld [vmem:[%s248 + $0x48] sm:$0xff]
        %v600 = vld [vmem:[%s248 + $0x50] sm:$0xff]
        %v601 = vld [vmem:[%s248 + $0x58] sm:$0xff]
        %v602 = vld [vmem:[%s248 + $0x60] sm:$0xff]
        %v603 = vld [vmem:[%s248 + $0x68] sm:$0xff]
        %v604 = vld [vmem:[%s248 + $0x70] sm:$0xff]
        %v605 = vld [vmem:[%s248 + $0x78] sm:$0xff]
        %v606 = vld [vmem:[%s248 + $0x80] sm:$0xff]
        %v607 = vld [vmem:[%s248 + $0x88] sm:$0xff]
        %v608 = vld [vmem:[%s248 + $0x90] sm:$0xff]
        %v609 = vld [vmem:[%s248 + $0x98] sm:$0xff]
        %v610 = vld [vmem:[%s248 + $0xa0] sm:$0xff]
        %v611 = vld [vmem:[%s248 + $0xa8] sm:$0xff]
        %v612 = vld [vmem:[%s248 + $0xb0] sm:$0xff]
        %v613 = vld [vmem:[%s248 + $0xb8] sm:$0xff]
        %v614 = vld [vmem:[%s248 + $0xc0] sm:$0xff]
        %v615 = vsel %vm514, %v590, %v539
        %v616 = vsel %vm515, %v591, %v540
        %v617 = vsel %vm516, %v592, %v541
        %v618 = vsel %vm517, %v593, %v542
        %v619 = vsel %vm518, %v594, %v543
        %v620 = vsel %vm519, %v595, %v544
        %v621 = vsel %vm520, %v596, %v545
        %v622 = vsel %vm521, %v597, %v546
        %v623 = vsel %vm522, %v598, %v547
        %v624 = vsel %vm523, %v599, %v548
        %v625 = vsel %vm524, %v600, %v549
        %v626 = vsel %vm525, %v601, %v550
        %v627 = vsel %vm526, %v602, %v551
        %v628 = vsel %vm527, %v603, %v552
        %v629 = vsel %vm528, %v604, %v553
        %v630 = vsel %vm529, %v605, %v554
        %v631 = vsel %vm530, %v606, %v555
        %v632 = vsel %vm531, %v607, %v556
        %v633 = vsel %vm532, %v608, %v557
        %v634 = vsel %vm533, %v609, %v558
        %v635 = vsel %vm534, %v610, %v559
        %v636 = vsel %vm535, %v611, %v560
        %v637 = vsel %vm536, %v612, %v561
        %v638 = vsel %vm537, %v613, %v562
        %v639 = vsel %vm538, %v614, %v563
        %v640 = vsel %vm464, %v565, %v615
        %v641 = vsel %vm465, %v566, %v616
        %v642 = vsel %vm466, %v567, %v617
        %v643 = vsel %vm467, %v568, %v618
        %v644 = vsel %vm468, %v569, %v619
        %v645 = vsel %vm469, %v570, %v620
        %v646 = vsel %vm470, %v571, %v621
        %v647 = vsel %vm471, %v572, %v622
        %v648 = vsel %vm472, %v573, %v623
        %v649 = vsel %vm473, %v574, %v624
        %v650 = vsel %vm474, %v575, %v625
        %v651 = vsel %vm475, %v576, %v626
        %v652 = vsel %vm476, %v577, %v627
        %v653 = vsel %vm477, %v578, %v628
        %v654 = vsel %vm478, %v579, %v629
        %v655 = vsel %vm479, %v580, %v630
        %v656 = vsel %vm480, %v581, %v631
        %v657 = vsel %vm481, %v582, %v632
        %v658 = vsel %vm482, %v583, %v633
        %v659 = vsel %vm483, %v584, %v634
        %v660 = vsel %vm484, %v585, %v635
        %v661 = vsel %vm485, %v586, %v636
        %v662 = vsel %vm486, %v587, %v637
        %v663 = vsel %vm487, %v588, %v638
        %v664 = vsel %vm488, %v589, %v639
        %s665 = scalar_lea.vmem [#allocation2], 200
        %666 = vst [vmem:[%s665] sm:$0xff] %v640
        %667 = vst [vmem:[%s665 + $0x8] sm:$0xff] %v641
        %668 = vst [vmem:[%s665 + $0x10] sm:$0xff] %v642
        %669 = vst [vmem:[%s665 + $0x18] sm:$0xff] %v643
        %670 = vst [vmem:[%s665 + $0x20] sm:$0xff] %v644
        %671 = vst [vmem:[%s665 + $0x28] sm:$0xff] %v645
        %672 = vst [vmem:[%s665 + $0x30] sm:$0xff] %v646
        %673 = vst [vmem:[%s665 + $0x38] sm:$0xff] %v647
        %674 = vst [vmem:[%s665 + $0x40] sm:$0xff] %v648
        %675 = vst [vmem:[%s665 + $0x48] sm:$0xff] %v649
        %676 = vst [vmem:[%s665 + $0x50] sm:$0xff] %v650
        %677 = vst [vmem:[%s665 + $0x58] sm:$0xff] %v651
        %678 = vst [vmem:[%s665 + $0x60] sm:$0xff] %v652
        %679 = vst [vmem:[%s665 + $0x68] sm:$0xff] %v653
        %680 = vst [vmem:[%s665 + $0x70] sm:$0xff] %v654
        %681 = vst [vmem:[%s665 + $0x78] sm:$0xff] %v655
        %682 = vst [vmem:[%s665 + $0x80] sm:$0xff] %v656
        %683 = vst [vmem:[%s665 + $0x88] sm:$0xff] %v657
        %684 = vst [vmem:[%s665 + $0x90] sm:$0xff] %v658
        %685 = vst [vmem:[%s665 + $0x98] sm:$0xff] %v659
        %686 = vst [vmem:[%s665 + $0xa0] sm:$0xff] %v660
        %687 = vst [vmem:[%s665 + $0xa8] sm:$0xff] %v661
        %688 = vst [vmem:[%s665 + $0xb0] sm:$0xff] %v662
        %689 = vst [vmem:[%s665 + $0xb8] sm:$0xff] %v663
        %690 = vst [vmem:[%s665 + $0xc0] sm:$0xff] %v664
        %v691 = vld [vmem:[#allocation6] sm:$0xff]
        %v692 = vld [vmem:[#allocation6 + $0x8] sm:$0xff]
        %v693 = vld [vmem:[#allocation6 + $0x10] sm:$0xff]
        %v694 = vld [vmem:[#allocation6 + $0x18] sm:$0xff]
        %v695 = vld [vmem:[#allocation6 + $0x20] sm:$0xff]
        %v696 = vld [vmem:[#allocation6 + $0x28] sm:$0xff]
        %v697 = vld [vmem:[#allocation6 + $0x30] sm:$0xff]
        %v698 = vld [vmem:[#allocation6 + $0x38] sm:$0xff]
        %v699 = vld [vmem:[#allocation6 + $0x40] sm:$0xff]
        %v700 = vld [vmem:[#allocation6 + $0x48] sm:$0xff]
        %v701 = vld [vmem:[#allocation6 + $0x50] sm:$0xff]
        %v702 = vld [vmem:[#allocation6 + $0x58] sm:$0xff]
        %v703 = vld [vmem:[#allocation6 + $0x60] sm:$0xff]
        %v704 = vld [vmem:[#allocation6 + $0x68] sm:$0xff]
        %v705 = vld [vmem:[#allocation6 + $0x70] sm:$0xff]
        %v706 = vld [vmem:[#allocation6 + $0x78] sm:$0xff]
        %v707 = vld [vmem:[#allocation6 + $0x80] sm:$0xff]
        %v708 = vld [vmem:[#allocation6 + $0x88] sm:$0xff]
        %v709 = vld [vmem:[#allocation6 + $0x90] sm:$0xff]
        %v710 = vld [vmem:[#allocation6 + $0x98] sm:$0xff]
        %v711 = vld [vmem:[#allocation6 + $0xa0] sm:$0xff]
        %v712 = vld [vmem:[#allocation6 + $0xa8] sm:$0xff]
        %v713 = vld [vmem:[#allocation6 + $0xb0] sm:$0xff]
        %v714 = vld [vmem:[#allocation6 + $0xb8] sm:$0xff]
        %v715 = vld [vmem:[#allocation6 + $0xc0] sm:$0xff]
        %vm716 = vcmp.ne.s32.totalorder %v691, 0
        %vm717 = vcmp.ne.s32.totalorder %v692, 0
        %vm718 = vcmp.ne.s32.totalorder %v693, 0
        %vm719 = vcmp.ne.s32.totalorder %v694, 0
        %vm720 = vcmp.ne.s32.totalorder %v695, 0
        %vm721 = vcmp.ne.s32.totalorder %v696, 0
        %vm722 = vcmp.ne.s32.totalorder %v697, 0
        %vm723 = vcmp.ne.s32.totalorder %v698, 0
        %vm724 = vcmp.ne.s32.totalorder %v699, 0
        %vm725 = vcmp.ne.s32.totalorder %v700, 0
        %vm726 = vcmp.ne.s32.totalorder %v701, 0
        %vm727 = vcmp.ne.s32.totalorder %v702, 0
        %vm728 = vcmp.ne.s32.totalorder %v703, 0
        %vm729 = vcmp.ne.s32.totalorder %v704, 0
        %vm730 = vcmp.ne.s32.totalorder %v705, 0
        %vm731 = vcmp.ne.s32.totalorder %v706, 0
        %vm732 = vcmp.ne.s32.totalorder %v707, 0
        %vm733 = vcmp.ne.s32.totalorder %v708, 0
        %vm734 = vcmp.ne.s32.totalorder %v709, 0
        %vm735 = vcmp.ne.s32.totalorder %v710, 0
        %vm736 = vcmp.ne.s32.totalorder %v711, 0
        %vm737 = vcmp.ne.s32.totalorder %v712, 0
        %vm738 = vcmp.ne.s32.totalorder %v713, 0
        %vm739 = vcmp.ne.s32.totalorder %v714, 0
        %vm740 = vcmp.ne.s32.totalorder %v715, 0
        %v741 = vld [vmem:[#allocation8] sm:$0xff]
        %v742 = vld [vmem:[#allocation8 + $0x8] sm:$0xff]
        %v743 = vld [vmem:[#allocation8 + $0x10] sm:$0xff]
        %v744 = vld [vmem:[#allocation8 + $0x18] sm:$0xff]
        %v745 = vld [vmem:[#allocation8 + $0x20] sm:$0xff]
        %v746 = vld [vmem:[#allocation8 + $0x28] sm:$0xff]
        %v747 = vld [vmem:[#allocation8 + $0x30] sm:$0xff]
        %v748 = vld [vmem:[#allocation8 + $0x38] sm:$0xff]
        %v749 = vld [vmem:[#allocation8 + $0x40] sm:$0xff]
        %v750 = vld [vmem:[#allocation8 + $0x48] sm:$0xff]
        %v751 = vld [vmem:[#allocation8 + $0x50] sm:$0xff]
        %v752 = vld [vmem:[#allocation8 + $0x58] sm:$0xff]
        %v753 = vld [vmem:[#allocation8 + $0x60] sm:$0xff]
        %v754 = vld [vmem:[#allocation8 + $0x68] sm:$0xff]
        %v755 = vld [vmem:[#allocation8 + $0x70] sm:$0xff]
        %v756 = vld [vmem:[#allocation8 + $0x78] sm:$0xff]
        %v757 = vld [vmem:[#allocation8 + $0x80] sm:$0xff]
        %v758 = vld [vmem:[#allocation8 + $0x88] sm:$0xff]
        %v759 = vld [vmem:[#allocation8 + $0x90] sm:$0xff]
        %v760 = vld [vmem:[#allocation8 + $0x98] sm:$0xff]
        %v761 = vld [vmem:[#allocation8 + $0xa0] sm:$0xff]
        %v762 = vld [vmem:[#allocation8 + $0xa8] sm:$0xff]
        %v763 = vld [vmem:[#allocation8 + $0xb0] sm:$0xff]
        %v764 = vld [vmem:[#allocation8 + $0xb8] sm:$0xff]
        %v765 = vld [vmem:[#allocation8 + $0xc0] sm:$0xff]
        %vm766 = vcmp.ne.s32.totalorder %v741, 0
        %vm767 = vcmp.ne.s32.totalorder %v742, 0
        %vm768 = vcmp.ne.s32.totalorder %v743, 0
        %vm769 = vcmp.ne.s32.totalorder %v744, 0
        %vm770 = vcmp.ne.s32.totalorder %v745, 0
        %vm771 = vcmp.ne.s32.totalorder %v746, 0
        %vm772 = vcmp.ne.s32.totalorder %v747, 0
        %vm773 = vcmp.ne.s32.totalorder %v748, 0
        %vm774 = vcmp.ne.s32.totalorder %v749, 0
        %vm775 = vcmp.ne.s32.totalorder %v750, 0
        %vm776 = vcmp.ne.s32.totalorder %v751, 0
        %vm777 = vcmp.ne.s32.totalorder %v752, 0
        %vm778 = vcmp.ne.s32.totalorder %v753, 0
        %vm779 = vcmp.ne.s32.totalorder %v754, 0
        %vm780 = vcmp.ne.s32.totalorder %v755, 0
        %vm781 = vcmp.ne.s32.totalorder %v756, 0
        %vm782 = vcmp.ne.s32.totalorder %v757, 0
        %vm783 = vcmp.ne.s32.totalorder %v758, 0
        %vm784 = vcmp.ne.s32.totalorder %v759, 0
        %vm785 = vcmp.ne.s32.totalorder %v760, 0
        %vm786 = vcmp.ne.s32.totalorder %v761, 0
        %vm787 = vcmp.ne.s32.totalorder %v762, 0
        %vm788 = vcmp.ne.s32.totalorder %v763, 0
        %vm789 = vcmp.ne.s32.totalorder %v764, 0
        %vm790 = vcmp.ne.s32.totalorder %v765, 0
        %v791 = vld [vmem:[%s564] sm:$0xff]
        %v792 = vld [vmem:[%s564 + $0x8] sm:$0xff]
        %v793 = vld [vmem:[%s564 + $0x10] sm:$0xff]
        %v794 = vld [vmem:[%s564 + $0x18] sm:$0xff]
        %v795 = vld [vmem:[%s564 + $0x20] sm:$0xff]
        %v796 = vld [vmem:[%s564 + $0x28] sm:$0xff]
        %v797 = vld [vmem:[%s564 + $0x30] sm:$0xff]
        %v798 = vld [vmem:[%s564 + $0x38] sm:$0xff]
        %v799 = vld [vmem:[%s564 + $0x40] sm:$0xff]
        %v800 = vld [vmem:[%s564 + $0x48] sm:$0xff]
        %v801 = vld [vmem:[%s564 + $0x50] sm:$0xff]
        %v802 = vld [vmem:[%s564 + $0x58] sm:$0xff]
        %v803 = vld [vmem:[%s564 + $0x60] sm:$0xff]
        %v804 = vld [vmem:[%s564 + $0x68] sm:$0xff]
        %v805 = vld [vmem:[%s564 + $0x70] sm:$0xff]
        %v806 = vld [vmem:[%s564 + $0x78] sm:$0xff]
        %v807 = vld [vmem:[%s564 + $0x80] sm:$0xff]
        %v808 = vld [vmem:[%s564 + $0x88] sm:$0xff]
        %v809 = vld [vmem:[%s564 + $0x90] sm:$0xff]
        %v810 = vld [vmem:[%s564 + $0x98] sm:$0xff]
        %v811 = vld [vmem:[%s564 + $0xa0] sm:$0xff]
        %v812 = vld [vmem:[%s564 + $0xa8] sm:$0xff]
        %v813 = vld [vmem:[%s564 + $0xb0] sm:$0xff]
        %v814 = vld [vmem:[%s564 + $0xb8] sm:$0xff]
        %v815 = vld [vmem:[%s564 + $0xc0] sm:$0xff]
        %v816 = vld [vmem:[%s363] sm:$0xff]
        %v817 = vld [vmem:[%s363 + $0x8] sm:$0xff]
        %v818 = vld [vmem:[%s363 + $0x10] sm:$0xff]
        %v819 = vld [vmem:[%s363 + $0x18] sm:$0xff]
        %v820 = vld [vmem:[%s363 + $0x20] sm:$0xff]
        %v821 = vld [vmem:[%s363 + $0x28] sm:$0xff]
        %v822 = vld [vmem:[%s363 + $0x30] sm:$0xff]
        %v823 = vld [vmem:[%s363 + $0x38] sm:$0xff]
        %v824 = vld [vmem:[%s363 + $0x40] sm:$0xff]
        %v825 = vld [vmem:[%s363 + $0x48] sm:$0xff]
        %v826 = vld [vmem:[%s363 + $0x50] sm:$0xff]
        %v827 = vld [vmem:[%s363 + $0x58] sm:$0xff]
        %v828 = vld [vmem:[%s363 + $0x60] sm:$0xff]
        %v829 = vld [vmem:[%s363 + $0x68] sm:$0xff]
        %v830 = vld [vmem:[%s363 + $0x70] sm:$0xff]
        %v831 = vld [vmem:[%s363 + $0x78] sm:$0xff]
        %v832 = vld [vmem:[%s363 + $0x80] sm:$0xff]
        %v833 = vld [vmem:[%s363 + $0x88] sm:$0xff]
        %v834 = vld [vmem:[%s363 + $0x90] sm:$0xff]
        %v835 = vld [vmem:[%s363 + $0x98] sm:$0xff]
        %v836 = vld [vmem:[%s363 + $0xa0] sm:$0xff]
        %v837 = vld [vmem:[%s363 + $0xa8] sm:$0xff]
        %v838 = vld [vmem:[%s363 + $0xb0] sm:$0xff]
        %v839 = vld [vmem:[%s363 + $0xb8] sm:$0xff]
        %v840 = vld [vmem:[%s363 + $0xc0] sm:$0xff]
        %v841 = vsel %vm766, %v816, %v791
        %v842 = vsel %vm767, %v817, %v792
        %v843 = vsel %vm768, %v818, %v793
        %v844 = vsel %vm769, %v819, %v794
        %v845 = vsel %vm770, %v820, %v795
        %v846 = vsel %vm771, %v821, %v796
        %v847 = vsel %vm772, %v822, %v797
        %v848 = vsel %vm773, %v823, %v798
        %v849 = vsel %vm774, %v824, %v799
        %v850 = vsel %vm775, %v825, %v800
        %v851 = vsel %vm776, %v826, %v801
        %v852 = vsel %vm777, %v827, %v802
        %v853 = vsel %vm778, %v828, %v803
        %v854 = vsel %vm779, %v829, %v804
        %v855 = vsel %vm780, %v830, %v805
        %v856 = vsel %vm781, %v831, %v806
        %v857 = vsel %vm782, %v832, %v807
        %v858 = vsel %vm783, %v833, %v808
        %v859 = vsel %vm784, %v834, %v809
        %v860 = vsel %vm785, %v835, %v810
        %v861 = vsel %vm786, %v836, %v811
        %v862 = vsel %vm787, %v837, %v812
        %v863 = vsel %vm788, %v838, %v813
        %v864 = vsel %vm789, %v839, %v814
        %v865 = vsel %vm790, %v840, %v815
        %v866 = vsel %vm716, %v791, %v841
        %v867 = vsel %vm717, %v792, %v842
        %v868 = vsel %vm718, %v793, %v843
        %v869 = vsel %vm719, %v794, %v844
        %v870 = vsel %vm720, %v795, %v845
        %v871 = vsel %vm721, %v796, %v846
        %v872 = vsel %vm722, %v797, %v847
        %v873 = vsel %vm723, %v798, %v848
        %v874 = vsel %vm724, %v799, %v849
        %v875 = vsel %vm725, %v800, %v850
        %v876 = vsel %vm726, %v801, %v851
        %v877 = vsel %vm727, %v802, %v852
        %v878 = vsel %vm728, %v803, %v853
        %v879 = vsel %vm729, %v804, %v854
        %v880 = vsel %vm730, %v805, %v855
        %v881 = vsel %vm731, %v806, %v856
        %v882 = vsel %vm732, %v807, %v857
        %v883 = vsel %vm733, %v808, %v858
        %v884 = vsel %vm734, %v809, %v859
        %v885 = vsel %vm735, %v810, %v860
        %v886 = vsel %vm736, %v811, %v861
        %v887 = vsel %vm737, %v812, %v862
        %v888 = vsel %vm738, %v813, %v863
        %v889 = vsel %vm739, %v814, %v864
        %v890 = vsel %vm740, %v815, %v865
        %s891 = scalar_lea.vmem [#allocation2], 400
        %892 = vst [vmem:[%s891] sm:$0xff] %v866
        %893 = vst [vmem:[%s891 + $0x8] sm:$0xff] %v867
        %894 = vst [vmem:[%s891 + $0x10] sm:$0xff] %v868
        %895 = vst [vmem:[%s891 + $0x18] sm:$0xff] %v869
        %896 = vst [vmem:[%s891 + $0x20] sm:$0xff] %v870
        %897 = vst [vmem:[%s891 + $0x28] sm:$0xff] %v871
        %898 = vst [vmem:[%s891 + $0x30] sm:$0xff] %v872
        %899 = vst [vmem:[%s891 + $0x38] sm:$0xff] %v873
        %900 = vst [vmem:[%s891 + $0x40] sm:$0xff] %v874
        %901 = vst [vmem:[%s891 + $0x48] sm:$0xff] %v875
        %902 = vst [vmem:[%s891 + $0x50] sm:$0xff] %v876
        %903 = vst [vmem:[%s891 + $0x58] sm:$0xff] %v877
        %904 = vst [vmem:[%s891 + $0x60] sm:$0xff] %v878
        %905 = vst [vmem:[%s891 + $0x68] sm:$0xff] %v879
        %906 = vst [vmem:[%s891 + $0x70] sm:$0xff] %v880
        %907 = vst [vmem:[%s891 + $0x78] sm:$0xff] %v881
        %908 = vst [vmem:[%s891 + $0x80] sm:$0xff] %v882
        %909 = vst [vmem:[%s891 + $0x88] sm:$0xff] %v883
        %910 = vst [vmem:[%s891 + $0x90] sm:$0xff] %v884
        %911 = vst [vmem:[%s891 + $0x98] sm:$0xff] %v885
        %912 = vst [vmem:[%s891 + $0xa0] sm:$0xff] %v886
        %913 = vst [vmem:[%s891 + $0xa8] sm:$0xff] %v887
        %914 = vst [vmem:[%s891 + $0xb0] sm:$0xff] %v888
        %915 = vst [vmem:[%s891 + $0xb8] sm:$0xff] %v889
        %916 = vst [vmem:[%s891 + $0xc0] sm:$0xff] %v890
        %v917 = vld [vmem:[#allocation2] sm:$0xff]
        %v918 = vld [vmem:[#allocation2 + $0x8] sm:$0xff]
        %v919 = vld [vmem:[#allocation2 + $0x10] sm:$0xff]
        %v920 = vld [vmem:[#allocation2 + $0x18] sm:$0xff]
        %v921 = vld [vmem:[#allocation2 + $0x20] sm:$0xff]
        %v922 = vld [vmem:[#allocation2 + $0x28] sm:$0xff]
        %v923 = vld [vmem:[#allocation2 + $0x30] sm:$0xff]
        %v924 = vld [vmem:[#allocation2 + $0x38] sm:$0xff]
        %v925 = vld [vmem:[#allocation2 + $0x40] sm:$0xff]
        %v926 = vld [vmem:[#allocation2 + $0x48] sm:$0xff]
        %v927 = vld [vmem:[#allocation2 + $0x50] sm:$0xff]
        %v928 = vld [vmem:[#allocation2 + $0x58] sm:$0xff]
        %v929 = vld [vmem:[#allocation2 + $0x60] sm:$0xff]
        %v930 = vld [vmem:[#allocation2 + $0x68] sm:$0xff]
        %v931 = vld [vmem:[#allocation2 + $0x70] sm:$0xff]
        %v932 = vld [vmem:[#allocation2 + $0x78] sm:$0xff]
        %v933 = vld [vmem:[#allocation2 + $0x80] sm:$0xff]
        %v934 = vld [vmem:[#allocation2 + $0x88] sm:$0xff]
        %v935 = vld [vmem:[#allocation2 + $0x90] sm:$0xff]
        %v936 = vld [vmem:[#allocation2 + $0x98] sm:$0xff]
        %v937 = vld [vmem:[#allocation2 + $0xa0] sm:$0xff]
        %v938 = vld [vmem:[#allocation2 + $0xa8] sm:$0xff]
        %v939 = vld [vmem:[#allocation2 + $0xb0] sm:$0xff]
        %v940 = vld [vmem:[#allocation2 + $0xb8] sm:$0xff]
        %v941 = vld [vmem:[#allocation2 + $0xc0] sm:$0xff]
        %v942 = vld [vmem:[#allocation2 + $0xc8] sm:$0xff]
        %v943 = vld [vmem:[#allocation2 + $0xd0] sm:$0xff]
        %v944 = vld [vmem:[#allocation2 + $0xd8] sm:$0xff]
        %v945 = vld [vmem:[#allocation2 + $0xe0] sm:$0xff]
        %v946 = vld [vmem:[#allocation2 + $0xe8] sm:$0xff]
        %v947 = vld [vmem:[#allocation2 + $0xf0] sm:$0xff]
        %v948 = vld [vmem:[#allocation2 + $0xf8] sm:$0xff]
        %v949 = vld [vmem:[#allocation2 + $0x100] sm:$0xff]
        %v950 = vld [vmem:[#allocation2 + $0x108] sm:$0xff]
        %v951 = vld [vmem:[#allocation2 + $0x110] sm:$0xff]
        %v952 = vld [vmem:[#allocation2 + $0x118] sm:$0xff]
        %v953 = vld [vmem:[#allocation2 + $0x120] sm:$0xff]
        %v954 = vld [vmem:[#allocation2 + $0x128] sm:$0xff]
        %v955 = vld [vmem:[#allocation2 + $0x130] sm:$0xff]
        %v956 = vld [vmem:[#allocation2 + $0x138] sm:$0xff]
        %v957 = vld [vmem:[#allocation2 + $0x140] sm:$0xff]
        %v958 = vld [vmem:[#allocation2 + $0x148] sm:$0xff]
        %v959 = vld [vmem:[#allocation2 + $0x150] sm:$0xff]
        %v960 = vld [vmem:[#allocation2 + $0x158] sm:$0xff]
        %v961 = vld [vmem:[#allocation2 + $0x160] sm:$0xff]
        %v962 = vld [vmem:[#allocation2 + $0x168] sm:$0xff]
        %v963 = vld [vmem:[#allocation2 + $0x170] sm:$0xff]
        %v964 = vld [vmem:[#allocation2 + $0x178] sm:$0xff]
        %v965 = vld [vmem:[#allocation2 + $0x180] sm:$0xff]
        %v966 = vld [vmem:[#allocation2 + $0x188] sm:$0xff]
        %v967 = vld [vmem:[#allocation2 + $0x190] sm:$0xff]
        %v968 = vld [vmem:[#allocation2 + $0x198] sm:$0xff]
        %v969 = vld [vmem:[#allocation2 + $0x1a0] sm:$0xff]
        %v970 = vld [vmem:[#allocation2 + $0x1a8] sm:$0xff]
        %v971 = vld [vmem:[#allocation2 + $0x1b0] sm:$0xff]
        %v972 = vld [vmem:[#allocation2 + $0x1b8] sm:$0xff]
        %v973 = vld [vmem:[#allocation2 + $0x1c0] sm:$0xff]
        %v974 = vld [vmem:[#allocation2 + $0x1c8] sm:$0xff]
        %v975 = vld [vmem:[#allocation2 + $0x1d0] sm:$0xff]
        %v976 = vld [vmem:[#allocation2 + $0x1d8] sm:$0xff]
        %v977 = vld [vmem:[#allocation2 + $0x1e0] sm:$0xff]
        %v978 = vld [vmem:[#allocation2 + $0x1e8] sm:$0xff]
        %v979 = vld [vmem:[#allocation2 + $0x1f0] sm:$0xff]
        %v980 = vld [vmem:[#allocation2 + $0x1f8] sm:$0xff]
        %v981 = vld [vmem:[#allocation2 + $0x200] sm:$0xff]
        %v982 = vld [vmem:[#allocation2 + $0x208] sm:$0xff]
        %v983 = vld [vmem:[#allocation2 + $0x210] sm:$0xff]
        %v984 = vld [vmem:[#allocation2 + $0x218] sm:$0xff]
        %v985 = vld [vmem:[#allocation2 + $0x220] sm:$0xff]
        %v986 = vld [vmem:[#allocation2 + $0x228] sm:$0xff]
        %v987 = vld [vmem:[#allocation2 + $0x230] sm:$0xff]
        %v988 = vld [vmem:[#allocation2 + $0x238] sm:$0xff]
        %v989 = vld [vmem:[#allocation2 + $0x240] sm:$0xff]
        %v990 = vld [vmem:[#allocation2 + $0x248] sm:$0xff]
        %v991 = vld [vmem:[#allocation2 + $0x250] sm:$0xff]
        %v992 = vpack.c.bf16 %v918, %v917
        %v993 = vpack.c.bf16 %v920, %v919
        %v994 = vpack.c.bf16 %v922, %v921
        %v995 = vpack.c.bf16 %v924, %v923
        %v996 = vpack.c.bf16 %v926, %v925
        %v997 = vpack.c.bf16 %v928, %v927
        %v998 = vpack.c.bf16 %v930, %v929
        %v999 = vpack.c.bf16 %v932, %v931
        %v1000 = vpack.c.bf16 %v934, %v933
        %v1001 = vpack.c.bf16 %v936, %v935
        %v1002 = vpack.c.bf16 %v938, %v937
        %v1003 = vpack.c.bf16 %v940, %v939
        %v1004 = vpack.c.bf16 %v942, %v941
        %v1005 = vpack.c.bf16 %v944, %v943
        %v1006 = vpack.c.bf16 %v946, %v945
        %v1007 = vpack.c.bf16 %v948, %v947
        %v1008 = vpack.c.bf16 %v950, %v949
        %v1009 = vpack.c.bf16 %v952, %v951
        %v1010 = vpack.c.bf16 %v954, %v953
        %v1011 = vpack.c.bf16 %v956, %v955
        %v1012 = vpack.c.bf16 %v958, %v957
        %v1013 = vpack.c.bf16 %v960, %v959
        %v1014 = vpack.c.bf16 %v962, %v961
        %v1015 = vpack.c.bf16 %v964, %v963
        %v1016 = vpack.c.bf16 %v966, %v965
        %v1017 = vpack.c.bf16 %v968, %v967
        %v1018 = vpack.c.bf16 %v970, %v969
        %v1019 = vpack.c.bf16 %v972, %v971
        %v1020 = vpack.c.bf16 %v974, %v973
        %v1021 = vpack.c.bf16 %v976, %v975
        %v1022 = vpack.c.bf16 %v978, %v977
        %v1023 = vpack.c.bf16 %v980, %v979
        %v1024 = vpack.c.bf16 %v982, %v981
        %v1025 = vpack.c.bf16 %v984, %v983
        %v1026 = vpack.c.bf16 %v986, %v985
        %v1027 = vpack.c.bf16 %v988, %v987
        %v1028 = vpack.c.bf16 %v990, %v989
        %v1029 = vpack.c.bf16 %v991, %v991
        %v1030 = vld [vmem:[#allocation9] sm:$0xf]
        %v1031 = vld [vmem:[#allocation9 + $0x4] sm:$0xf]
        %v1032 = vld [vmem:[#allocation9 + $0x8] sm:$0xf]
        %v1033 = vld [vmem:[#allocation9 + $0xc] sm:$0xf]
        %v1034 = vld [vmem:[#allocation9 + $0x10] sm:$0xf]
        %v1035 = vld [vmem:[#allocation9 + $0x14] sm:$0xf]
        %v1036 = vld [vmem:[#allocation9 + $0x18] sm:$0xf]
        %v1037 = vld [vmem:[#allocation9 + $0x1c] sm:$0xf]
        %v1038 = vld [vmem:[#allocation9 + $0x20] sm:$0xf]
        %v1039 = vld [vmem:[#allocation9 + $0x24] sm:$0xf]
        %v1040 = vld [vmem:[#allocation9 + $0x28] sm:$0xf]
        %v1041 = vld [vmem:[#allocation9 + $0x2c] sm:$0xf]
        %v1042 = vld [vmem:[#allocation9 + $0x30] sm:$0xf]
        %v1043 = vld [vmem:[#allocation9 + $0x34] sm:$0xf]
        %v1044 = vld [vmem:[#allocation9 + $0x38] sm:$0xf]
        %v1045 = vld [vmem:[#allocation9 + $0x3c] sm:$0xf]
        %v1046 = vld [vmem:[%s4] sm:$0x1]
        %v1048 = vlaneseq
        %v1049 = vshrl.u32 %v1048, 7
        %v1050 = vsub.s32 0, %v1049
        %v1051 = vrot.slane %v1046, %v1050
        %v1069 = vunpack.c.l.b16 %v1030
        %v1070 = vunpack.c.l.b16 %v1031
        %v1071 = vunpack.c.l.b16 %v1032
        %v1072 = vunpack.c.l.b16 %v1033
        %v1073 = vunpack.c.l.b16 %v1034
        %v1074 = vunpack.c.l.b16 %v1035
        %v1075 = vunpack.c.l.b16 %v1036
        %v1076 = vunpack.c.l.b16 %v1037
        %v1077 = vunpack.c.l.b16 %v1038
        %v1078 = vunpack.c.l.b16 %v1039
        %v1079 = vunpack.c.l.b16 %v1040
        %v1080 = vunpack.c.l.b16 %v1041
        %v1081 = vunpack.c.l.b16 %v1042
        %v1082 = vunpack.c.l.b16 %v1043
        %v1083 = vunpack.c.l.b16 %v1044
        %v1084 = vunpack.c.l.b16 %v1045
        %v1085 = vpack.c.b16 %v1070, %v1069
        %v1086 = vpack.c.b16 %v1072, %v1071
        %v1087 = vpack.c.b16 %v1074, %v1073
        %v1088 = vpack.c.b16 %v1076, %v1075
        %v1089 = vpack.c.b16 %v1078, %v1077
        %v1090 = vpack.c.b16 %v1080, %v1079
        %v1091 = vpack.c.b16 %v1082, %v1081
        %v1092 = vpack.c.b16 %v1084, %v1083
        %1101 = vmatprep.subr.bf16.mxu0 0
        %1102 = vmatpush1.bf16.msra.mxu0 %v1085
        %1103 = vmatprep.subr.bf16.mxu0 0
        %1104 = vmatpush1.bf16.msra.mxu0 %v1086
        %1105 = vmatprep.subr.bf16.mxu0 0
        %1106 = vmatpush1.bf16.msra.mxu0 %v1087
        %1107 = vmatprep.subr.bf16.mxu0 0
        %1108 = vmatpush1.bf16.msra.mxu0 %v1088
        %1109 = vmatprep.subr.bf16.mxu0 0
        %1110 = vmatpush1.bf16.msra.mxu0 %v1089
        %1111 = vmatprep.subr.bf16.mxu0 0
        %1112 = vmatpush1.bf16.msra.mxu0 %v1090
        %1113 = vmatprep.subr.bf16.mxu0 0
        %1114 = vmatpush1.bf16.msra.mxu0 %v1091
        %1115 = vmatprep.subr.bf16.mxu0 0
        %1116 = vmatpush1.bf16.msra.mxu0 %v1092
        %1117 = vmatprep.subr.bf16.mxu0 0
        %1118 = vmatpush1.bf16.msra.mxu0 0
        %1119 = vmatprep.subr.bf16.mxu0 0
        %1120 = vmatpush1.bf16.msra.mxu0 0
        %1121 = vmatprep.subr.bf16.mxu0 0
        %1122 = vmatpush1.bf16.msra.mxu0 0
        %1123 = vmatprep.subr.bf16.mxu0 0
        %1124 = vmatpush1.bf16.msra.mxu0 0
        %1125 = vmatprep.subr.bf16.mxu0 0
        %1126 = vmatpush1.bf16.msra.mxu0 0
        %1127 = vmatprep.subr.bf16.mxu0 0
        %1128 = vmatpush1.bf16.msra.mxu0 0
        %1129 = vmatprep.subr.bf16.mxu0 0
        %1130 = vmatpush1.bf16.msra.mxu0 0
        %1131 = vmatprep.subr.bf16.mxu0 0
        %1132 = vmatpush1.bf16.msra.mxu0 0
        %1133 = vmatprep.mubr.bf16.mxu0 0
        %1134 = vmatmul.mubr.bf16.gmra.mrb[0].mxu0 %v992
        %v1135 = vpop.f32.mrb[0].mxu0
        %v1136 = vadd.f32 %v1051, %v1135
        %v1137 = vpop.f32.mrb[0].mxu0
        %v1138 = vpop.f32.mrb[0].mxu0
        %v1139 = vadd.f32 %v1051, %v1138
        %v1140 = vpop.f32.mrb[0].mxu0
        %1141 = vmatprep.mubr.bf16.mxu0 0
        %1142 = vmatmul.mubr.bf16.gmra.mrb[0].mxu0 %v993
        %v1143 = vpop.f32.mrb[0].mxu0
        %v1144 = vadd.f32 %v1051, %v1143
        %v1145 = vpop.f32.mrb[0].mxu0
        %v1146 = vpop.f32.mrb[0].mxu0
        %v1147 = vadd.f32 %v1051, %v1146
        %v1148 = vpop.f32.mrb[0].mxu0
        %1149 = vmatprep.mubr.bf16.mxu0 0
        %1150 = vmatmul.mubr.bf16.gmra.mrb[0].mxu0 %v994
        %v1151 = vpop.f32.mrb[0].mxu0
        %v1152 = vadd.f32 %v1051, %v1151
        %v1153 = vpop.f32.mrb[0].mxu0
        %v1154 = vpop.f32.mrb[0].mxu0
        %v1155 = vadd.f32 %v1051, %v1154
        %v1156 = vpop.f32.mrb[0].mxu0
        %1157 = vmatprep.mubr.bf16.mxu0 0
        %1158 = vmatmul.mubr.bf16.gmra.mrb[0].mxu0 %v995
        %v1159 = vpop.f32.mrb[0].mxu0
        %v1160 = vadd.f32 %v1051, %v1159
        %v1161 = vpop.f32.mrb[0].mxu0
        %v1162 = vpop.f32.mrb[0].mxu0
        %v1163 = vadd.f32 %v1051, %v1162
        %v1164 = vpop.f32.mrb[0].mxu0
        %1165 = vmatprep.mubr.bf16.mxu0 0
        %1166 = vmatmul.mubr.bf16.gmra.mrb[0].mxu0 %v996
        %v1167 = vpop.f32.mrb[0].mxu0
        %v1168 = vadd.f32 %v1051, %v1167
        %v1169 = vpop.f32.mrb[0].mxu0
        %v1170 = vpop.f32.mrb[0].mxu0
        %v1171 = vadd.f32 %v1051, %v1170
        %v1172 = vpop.f32.mrb[0].mxu0
        %1173 = vmatprep.mubr.bf16.mxu0 0
        %1174 = vmatmul.mubr.bf16.gmra.mrb[0].mxu0 %v997
        %v1175 = vpop.f32.mrb[0].mxu0
        %v1176 = vadd.f32 %v1051, %v1175
        %v1177 = vpop.f32.mrb[0].mxu0
        %v1178 = vpop.f32.mrb[0].mxu0
        %v1179 = vadd.f32 %v1051, %v1178
        %v1180 = vpop.f32.mrb[0].mxu0
        %1181 = vmatprep.mubr.bf16.mxu0 0
        %1182 = vmatmul.mubr.bf16.gmra.mrb[0].mxu0 %v998
        %v1183 = vpop.f32.mrb[0].mxu0
        %v1184 = vadd.f32 %v1051, %v1183
        %v1185 = vpop.f32.mrb[0].mxu0
        %v1186 = vpop.f32.mrb[0].mxu0
        %v1187 = vadd.f32 %v1051, %v1186
        %v1188 = vpop.f32.mrb[0].mxu0
        %1189 = vmatprep.mubr.bf16.mxu0 0
        %1190 = vmatmul.mubr.bf16.gmra.mrb[0].mxu0 %v999
        %v1191 = vpop.f32.mrb[0].mxu0
        %v1192 = vadd.f32 %v1051, %v1191
        %v1193 = vpop.f32.mrb[0].mxu0
        %v1194 = vpop.f32.mrb[0].mxu0
        %v1195 = vadd.f32 %v1051, %v1194
        %v1196 = vpop.f32.mrb[0].mxu0
        %1197 = vmatprep.mubr.bf16.mxu0 0
        %1198 = vmatmul.mubr.bf16.gmra.mrb[0].mxu0 %v1000
        %v1199 = vpop.f32.mrb[0].mxu0
        %v1200 = vadd.f32 %v1051, %v1199
        %v1201 = vpop.f32.mrb[0].mxu0
        %v1202 = vpop.f32.mrb[0].mxu0
        %v1203 = vadd.f32 %v1051, %v1202
        %v1204 = vpop.f32.mrb[0].mxu0
        %1205 = vmatprep.mubr.bf16.mxu0 0
        %1206 = vmatmul.mubr.bf16.gmra.mrb[0].mxu0 %v1001
        %v1207 = vpop.f32.mrb[0].mxu0
        %v1208 = vadd.f32 %v1051, %v1207
        %v1209 = vpop.f32.mrb[0].mxu0
        %v1210 = vpop.f32.mrb[0].mxu0
        %v1211 = vadd.f32 %v1051, %v1210
        %v1212 = vpop.f32.mrb[0].mxu0
        %1213 = vmatprep.mubr.bf16.mxu0 0
        %1214 = vmatmul.mubr.bf16.gmra.mrb[0].mxu0 %v1002
        %v1215 = vpop.f32.mrb[0].mxu0
        %v1216 = vadd.f32 %v1051, %v1215
        %v1217 = vpop.f32.mrb[0].mxu0
        %v1218 = vpop.f32.mrb[0].mxu0
        %v1219 = vadd.f32 %v1051, %v1218
        %v1220 = vpop.f32.mrb[0].mxu0
        %1221 = vmatprep.mubr.bf16.mxu0 0
        %1222 = vmatmul.mubr.bf16.gmra.mrb[0].mxu0 %v1003
        %v1223 = vpop.f32.mrb[0].mxu0
        %v1224 = vadd.f32 %v1051, %v1223
        %v1225 = vpop.f32.mrb[0].mxu0
        %v1226 = vpop.f32.mrb[0].mxu0
        %v1227 = vadd.f32 %v1051, %v1226
        %v1228 = vpop.f32.mrb[0].mxu0
        %1229 = vmatprep.mubr.bf16.mxu0 0
        %1230 = vmatmul.mubr.bf16.gmra.mrb[0].mxu0 %v1004
        %v1231 = vpop.f32.mrb[0].mxu0
        %v1232 = vadd.f32 %v1051, %v1231
        %v1233 = vpop.f32.mrb[0].mxu0
        %v1234 = vpop.f32.mrb[0].mxu0
        %v1235 = vadd.f32 %v1051, %v1234
        %v1236 = vpop.f32.mrb[0].mxu0
        %1237 = vmatprep.mubr.bf16.mxu0 0
        %1238 = vmatmul.mubr.bf16.gmra.mrb[0].mxu0 %v1005
        %v1239 = vpop.f32.mrb[0].mxu0
        %v1240 = vadd.f32 %v1051, %v1239
        %v1241 = vpop.f32.mrb[0].mxu0
        %v1242 = vpop.f32.mrb[0].mxu0
        %v1243 = vadd.f32 %v1051, %v1242
        %v1244 = vpop.f32.mrb[0].mxu0
        %1245 = vmatprep.mubr.bf16.mxu0 0
        %1246 = vmatmul.mubr.bf16.gmra.mrb[0].mxu0 %v1006
        %v1247 = vpop.f32.mrb[0].mxu0
        %v1248 = vadd.f32 %v1051, %v1247
        %v1249 = vpop.f32.mrb[0].mxu0
        %v1250 = vpop.f32.mrb[0].mxu0
        %v1251 = vadd.f32 %v1051, %v1250
        %v1252 = vpop.f32.mrb[0].mxu0
        %1253 = vmatprep.mubr.bf16.mxu0 0
        %1254 = vmatmul.mubr.bf16.gmra.mrb[0].mxu0 %v1007
        %v1255 = vpop.f32.mrb[0].mxu0
        %v1256 = vadd.f32 %v1051, %v1255
        %v1257 = vpop.f32.mrb[0].mxu0
        %v1258 = vpop.f32.mrb[0].mxu0
        %v1259 = vadd.f32 %v1051, %v1258
        %v1260 = vpop.f32.mrb[0].mxu0
        %1261 = vmatprep.mubr.bf16.mxu0 0
        %1262 = vmatmul.mubr.bf16.gmra.mrb[0].mxu0 %v1008
        %v1263 = vpop.f32.mrb[0].mxu0
        %v1264 = vadd.f32 %v1051, %v1263
        %v1265 = vpop.f32.mrb[0].mxu0
        %v1266 = vpop.f32.mrb[0].mxu0
        %v1267 = vadd.f32 %v1051, %v1266
        %v1268 = vpop.f32.mrb[0].mxu0
        %1269 = vmatprep.mubr.bf16.mxu0 0
        %1270 = vmatmul.mubr.bf16.gmra.mrb[0].mxu0 %v1009
        %v1271 = vpop.f32.mrb[0].mxu0
        %v1272 = vadd.f32 %v1051, %v1271
        %v1273 = vpop.f32.mrb[0].mxu0
        %v1274 = vpop.f32.mrb[0].mxu0
        %v1275 = vadd.f32 %v1051, %v1274
        %v1276 = vpop.f32.mrb[0].mxu0
        %1277 = vmatprep.mubr.bf16.mxu0 0
        %1278 = vmatmul.mubr.bf16.gmra.mrb[0].mxu0 %v1010
        %v1279 = vpop.f32.mrb[0].mxu0
        %v1280 = vadd.f32 %v1051, %v1279
        %v1281 = vpop.f32.mrb[0].mxu0
        %v1282 = vpop.f32.mrb[0].mxu0
        %v1283 = vadd.f32 %v1051, %v1282
        %v1284 = vpop.f32.mrb[0].mxu0
        %1285 = vmatprep.mubr.bf16.mxu0 0
        %1286 = vmatmul.mubr.bf16.gmra.mrb[0].mxu0 %v1011
        %v1287 = vpop.f32.mrb[0].mxu0
        %v1288 = vadd.f32 %v1051, %v1287
        %v1289 = vpop.f32.mrb[0].mxu0
        %v1290 = vpop.f32.mrb[0].mxu0
        %v1291 = vadd.f32 %v1051, %v1290
        %v1292 = vpop.f32.mrb[0].mxu0
        %1293 = vmatprep.mubr.bf16.mxu0 0
        %1294 = vmatmul.mubr.bf16.gmra.mrb[0].mxu0 %v1012
        %v1295 = vpop.f32.mrb[0].mxu0
        %v1296 = vadd.f32 %v1051, %v1295
        %v1297 = vpop.f32.mrb[0].mxu0
        %v1298 = vpop.f32.mrb[0].mxu0
        %v1299 = vadd.f32 %v1051, %v1298
        %v1300 = vpop.f32.mrb[0].mxu0
        %1301 = vmatprep.mubr.bf16.mxu0 0
        %1302 = vmatmul.mubr.bf16.gmra.mrb[0].mxu0 %v1013
        %v1303 = vpop.f32.mrb[0].mxu0
        %v1304 = vadd.f32 %v1051, %v1303
        %v1305 = vpop.f32.mrb[0].mxu0
        %v1306 = vpop.f32.mrb[0].mxu0
        %v1307 = vadd.f32 %v1051, %v1306
        %v1308 = vpop.f32.mrb[0].mxu0
        %1309 = vmatprep.mubr.bf16.mxu0 0
        %1310 = vmatmul.mubr.bf16.gmra.mrb[0].mxu0 %v1014
        %v1311 = vpop.f32.mrb[0].mxu0
        %v1312 = vadd.f32 %v1051, %v1311
        %v1313 = vpop.f32.mrb[0].mxu0
        %v1314 = vpop.f32.mrb[0].mxu0
        %v1315 = vadd.f32 %v1051, %v1314
        %v1316 = vpop.f32.mrb[0].mxu0
        %1317 = vmatprep.mubr.bf16.mxu0 0
        %1318 = vmatmul.mubr.bf16.gmra.mrb[0].mxu0 %v1015
        %v1319 = vpop.f32.mrb[0].mxu0
        %v1320 = vadd.f32 %v1051, %v1319
        %v1321 = vpop.f32.mrb[0].mxu0
        %v1322 = vpop.f32.mrb[0].mxu0
        %v1323 = vadd.f32 %v1051, %v1322
        %v1324 = vpop.f32.mrb[0].mxu0
        %1325 = vmatprep.mubr.bf16.mxu0 0
        %1326 = vmatmul.mubr.bf16.gmra.mrb[0].mxu0 %v1016
        %v1327 = vpop.f32.mrb[0].mxu0
        %v1328 = vadd.f32 %v1051, %v1327
        %v1329 = vpop.f32.mrb[0].mxu0
        %v1330 = vpop.f32.mrb[0].mxu0
        %v1331 = vadd.f32 %v1051, %v1330
        %v1332 = vpop.f32.mrb[0].mxu0
        %1333 = vmatprep.mubr.bf16.mxu0 0
        %1334 = vmatmul.mubr.bf16.gmra.mrb[0].mxu0 %v1017
        %v1335 = vpop.f32.mrb[0].mxu0
        %v1336 = vadd.f32 %v1051, %v1335
        %v1337 = vpop.f32.mrb[0].mxu0
        %v1338 = vpop.f32.mrb[0].mxu0
        %v1339 = vadd.f32 %v1051, %v1338
        %v1340 = vpop.f32.mrb[0].mxu0
        %1341 = vmatprep.mubr.bf16.mxu0 0
        %1342 = vmatmul.mubr.bf16.gmra.mrb[0].mxu0 %v1018
        %v1343 = vpop.f32.mrb[0].mxu0
        %v1344 = vadd.f32 %v1051, %v1343
        %v1345 = vpop.f32.mrb[0].mxu0
        %v1346 = vpop.f32.mrb[0].mxu0
        %v1347 = vadd.f32 %v1051, %v1346
        %v1348 = vpop.f32.mrb[0].mxu0
        %1349 = vmatprep.mubr.bf16.mxu0 0
        %1350 = vmatmul.mubr.bf16.gmra.mrb[0].mxu0 %v1019
        %v1351 = vpop.f32.mrb[0].mxu0
        %v1352 = vadd.f32 %v1051, %v1351
        %v1353 = vpop.f32.mrb[0].mxu0
        %v1354 = vpop.f32.mrb[0].mxu0
        %v1355 = vadd.f32 %v1051, %v1354
        %v1356 = vpop.f32.mrb[0].mxu0
        %1357 = vmatprep.mubr.bf16.mxu0 0
        %1358 = vmatmul.mubr.bf16.gmra.mrb[0].mxu0 %v1020
        %v1359 = vpop.f32.mrb[0].mxu0
        %v1360 = vadd.f32 %v1051, %v1359
        %v1361 = vpop.f32.mrb[0].mxu0
        %v1362 = vpop.f32.mrb[0].mxu0
        %v1363 = vadd.f32 %v1051, %v1362
        %v1364 = vpop.f32.mrb[0].mxu0
        %1365 = vmatprep.mubr.bf16.mxu0 0
        %1366 = vmatmul.mubr.bf16.gmra.mrb[0].mxu0 %v1021
        %v1367 = vpop.f32.mrb[0].mxu0
        %v1368 = vadd.f32 %v1051, %v1367
        %v1369 = vpop.f32.mrb[0].mxu0
        %v1370 = vpop.f32.mrb[0].mxu0
        %v1371 = vadd.f32 %v1051, %v1370
        %v1372 = vpop.f32.mrb[0].mxu0
        %1373 = vmatprep.mubr.bf16.mxu0 0
        %1374 = vmatmul.mubr.bf16.gmra.mrb[0].mxu0 %v1022
        %v1375 = vpop.f32.mrb[0].mxu0
        %v1376 = vadd.f32 %v1051, %v1375
        %v1377 = vpop.f32.mrb[0].mxu0
        %v1378 = vpop.f32.mrb[0].mxu0
        %v1379 = vadd.f32 %v1051, %v1378
        %v1380 = vpop.f32.mrb[0].mxu0
        %1381 = vmatprep.mubr.bf16.mxu0 0
        %1382 = vmatmul.mubr.bf16.gmra.mrb[0].mxu0 %v1023
        %v1383 = vpop.f32.mrb[0].mxu0
        %v1384 = vadd.f32 %v1051, %v1383
        %v1385 = vpop.f32.mrb[0].mxu0
        %v1386 = vpop.f32.mrb[0].mxu0
        %v1387 = vadd.f32 %v1051, %v1386
        %v1388 = vpop.f32.mrb[0].mxu0
        %1389 = vmatprep.mubr.bf16.mxu0 0
        %1390 = vmatmul.mubr.bf16.gmra.mrb[0].mxu0 %v1024
        %v1391 = vpop.f32.mrb[0].mxu0
        %v1392 = vadd.f32 %v1051, %v1391
        %v1393 = vpop.f32.mrb[0].mxu0
        %v1394 = vpop.f32.mrb[0].mxu0
        %v1395 = vadd.f32 %v1051, %v1394
        %v1396 = vpop.f32.mrb[0].mxu0
        %1397 = vmatprep.mubr.bf16.mxu0 0
        %1398 = vmatmul.mubr.bf16.gmra.mrb[0].mxu0 %v1025
        %v1399 = vpop.f32.mrb[0].mxu0
        %v1400 = vadd.f32 %v1051, %v1399
        %v1401 = vpop.f32.mrb[0].mxu0
        %v1402 = vpop.f32.mrb[0].mxu0
        %v1403 = vadd.f32 %v1051, %v1402
        %v1404 = vpop.f32.mrb[0].mxu0
        %1405 = vmatprep.mubr.bf16.mxu0 0
        %1406 = vmatmul.mubr.bf16.gmra.mrb[0].mxu0 %v1026
        %v1407 = vpop.f32.mrb[0].mxu0
        %v1408 = vadd.f32 %v1051, %v1407
        %v1409 = vpop.f32.mrb[0].mxu0
        %v1410 = vpop.f32.mrb[0].mxu0
        %v1411 = vadd.f32 %v1051, %v1410
        %v1412 = vpop.f32.mrb[0].mxu0
        %1413 = vmatprep.mubr.bf16.mxu0 0
        %1414 = vmatmul.mubr.bf16.gmra.mrb[0].mxu0 %v1027
        %v1415 = vpop.f32.mrb[0].mxu0
        %v1416 = vadd.f32 %v1051, %v1415
        %v1417 = vpop.f32.mrb[0].mxu0
        %v1418 = vpop.f32.mrb[0].mxu0
        %v1419 = vadd.f32 %v1051, %v1418
        %v1420 = vpop.f32.mrb[0].mxu0
        %1421 = vmatprep.mubr.bf16.mxu0 0
        %1422 = vmatmul.mubr.bf16.gmra.mrb[0].mxu0 %v1028
        %v1423 = vpop.f32.mrb[0].mxu0
        %v1424 = vadd.f32 %v1051, %v1423
        %v1425 = vpop.f32.mrb[0].mxu0
        %v1426 = vpop.f32.mrb[0].mxu0
        %v1427 = vadd.f32 %v1051, %v1426
        %v1428 = vpop.f32.mrb[0].mxu0
        %1429 = vmatprep.mubr.bf16.mxu0 0
        %1430 = vmatmul.mubr.bf16.gmra.mrb[0].mxu0 %v1029
        %v1431 = vpop.f32.mrb[0].mxu0
        %v1432 = vadd.f32 %v1051, %v1431
        %v1433 = vpop.f32.mrb[0].mxu0
        %v1434 = vpop.f32.mrb[0].mxu0
        %v1435 = vpop.f32.mrb[0].mxu0
        %1436 = vdwg.mxu0
        %1437 = vst [vmem:[%s286] sm:$0xff] %v1136
        %1438 = vst [vmem:[%s286 + $0x8] sm:$0xff] %v1139
        %1439 = vst [vmem:[%s286 + $0x10] sm:$0xff] %v1144
        %1440 = vst [vmem:[%s286 + $0x18] sm:$0xff] %v1147
        %1441 = vst [vmem:[%s286 + $0x20] sm:$0xff] %v1152
        %1442 = vst [vmem:[%s286 + $0x28] sm:$0xff] %v1155
        %1443 = vst [vmem:[%s286 + $0x30] sm:$0xff] %v1160
        %1444 = vst [vmem:[%s286 + $0x38] sm:$0xff] %v1163
        %1445 = vst [vmem:[%s286 + $0x40] sm:$0xff] %v1168
        %1446 = vst [vmem:[%s286 + $0x48] sm:$0xff] %v1171
        %1447 = vst [vmem:[%s286 + $0x50] sm:$0xff] %v1176
        %1448 = vst [vmem:[%s286 + $0x58] sm:$0xff] %v1179
        %1449 = vst [vmem:[%s286 + $0x60] sm:$0xff] %v1184
        %1450 = vst [vmem:[%s286 + $0x68] sm:$0xff] %v1187
        %1451 = vst [vmem:[%s286 + $0x70] sm:$0xff] %v1192
        %1452 = vst [vmem:[%s286 + $0x78] sm:$0xff] %v1195
        %1453 = vst [vmem:[%s286 + $0x80] sm:$0xff] %v1200
        %1454 = vst [vmem:[%s286 + $0x88] sm:$0xff] %v1203
        %1455 = vst [vmem:[%s286 + $0x90] sm:$0xff] %v1208
        %1456 = vst [vmem:[%s286 + $0x98] sm:$0xff] %v1211
        %1457 = vst [vmem:[%s286 + $0xa0] sm:$0xff] %v1216
        %1458 = vst [vmem:[%s286 + $0xa8] sm:$0xff] %v1219
        %1459 = vst [vmem:[%s286 + $0xb0] sm:$0xff] %v1224
        %1460 = vst [vmem:[%s286 + $0xb8] sm:$0xff] %v1227
        %1461 = vst [vmem:[%s286 + $0xc0] sm:$0xff] %v1232
        %1462 = vst [vmem:[%s286 + $0xc8] sm:$0xff] %v1235
        %1463 = vst [vmem:[%s286 + $0xd0] sm:$0xff] %v1240
        %1464 = vst [vmem:[%s286 + $0xd8] sm:$0xff] %v1243
        %1465 = vst [vmem:[%s286 + $0xe0] sm:$0xff] %v1248
        %1466 = vst [vmem:[%s286 + $0xe8] sm:$0xff] %v1251
        %1467 = vst [vmem:[%s286 + $0xf0] sm:$0xff] %v1256
        %1468 = vst [vmem:[%s286 + $0xf8] sm:$0xff] %v1259
        %1469 = vst [vmem:[%s286 + $0x100] sm:$0xff] %v1264
        %1470 = vst [vmem:[%s286 + $0x108] sm:$0xff] %v1267
        %1471 = vst [vmem:[%s286 + $0x110] sm:$0xff] %v1272
        %1472 = vst [vmem:[%s286 + $0x118] sm:$0xff] %v1275
        %1473 = vst [vmem:[%s286 + $0x120] sm:$0xff] %v1280
        %1474 = vst [vmem:[%s286 + $0x128] sm:$0xff] %v1283
        %1475 = vst [vmem:[%s286 + $0x130] sm:$0xff] %v1288
        %1476 = vst [vmem:[%s286 + $0x138] sm:$0xff] %v1291
        %1477 = vst [vmem:[%s286 + $0x140] sm:$0xff] %v1296
        %1478 = vst [vmem:[%s286 + $0x148] sm:$0xff] %v1299
        %1479 = vst [vmem:[%s286 + $0x150] sm:$0xff] %v1304
        %1480 = vst [vmem:[%s286 + $0x158] sm:$0xff] %v1307
        %1481 = vst [vmem:[%s286 + $0x160] sm:$0xff] %v1312
        %1482 = vst [vmem:[%s286 + $0x168] sm:$0xff] %v1315
        %1483 = vst [vmem:[%s286 + $0x170] sm:$0xff] %v1320
        %1484 = vst [vmem:[%s286 + $0x178] sm:$0xff] %v1323
        %1485 = vst [vmem:[%s286 + $0x180] sm:$0xff] %v1328
        %1486 = vst [vmem:[%s286 + $0x188] sm:$0xff] %v1331
        %1487 = vst [vmem:[%s286 + $0x190] sm:$0xff] %v1336
        %1488 = vst [vmem:[%s286 + $0x198] sm:$0xff] %v1339
        %1489 = vst [vmem:[%s286 + $0x1a0] sm:$0xff] %v1344
        %1490 = vst [vmem:[%s286 + $0x1a8] sm:$0xff] %v1347
        %1491 = vst [vmem:[%s286 + $0x1b0] sm:$0xff] %v1352
        %1492 = vst [vmem:[%s286 + $0x1b8] sm:$0xff] %v1355
        %1493 = vst [vmem:[%s286 + $0x1c0] sm:$0xff] %v1360
        %1494 = vst [vmem:[%s286 + $0x1c8] sm:$0xff] %v1363
        %1495 = vst [vmem:[%s286 + $0x1d0] sm:$0xff] %v1368
        %1496 = vst [vmem:[%s286 + $0x1d8] sm:$0xff] %v1371
        %1497 = vst [vmem:[%s286 + $0x1e0] sm:$0xff] %v1376
        %1498 = vst [vmem:[%s286 + $0x1e8] sm:$0xff] %v1379
        %1499 = vst [vmem:[%s286 + $0x1f0] sm:$0xff] %v1384
        %1500 = vst [vmem:[%s286 + $0x1f8] sm:$0xff] %v1387
        %1501 = vst [vmem:[%s286 + $0x200] sm:$0xff] %v1392
        %1502 = vst [vmem:[%s286 + $0x208] sm:$0xff] %v1395
        %1503 = vst [vmem:[%s286 + $0x210] sm:$0xff] %v1400
        %1504 = vst [vmem:[%s286 + $0x218] sm:$0xff] %v1403
        %1505 = vst [vmem:[%s286 + $0x220] sm:$0xff] %v1408
        %1506 = vst [vmem:[%s286 + $0x228] sm:$0xff] %v1411
        %1507 = vst [vmem:[%s286 + $0x230] sm:$0xff] %v1416
        %1508 = vst [vmem:[%s286 + $0x238] sm:$0xff] %v1419
        %1509 = vst [vmem:[%s286 + $0x240] sm:$0xff] %v1424
        %1510 = vst [vmem:[%s286 + $0x248] sm:$0xff] %v1427
        %1511 = vst [vmem:[%s286 + $0x250] sm:$0xff] %v1432
        %s1512 = sand.u32 %s142, 1
        %s1513 = scalar_lea.sflag [#allocation5], %s1512
        %s1514 = sand.u32 %s142, 1
        %s1515 = smul.addr %s1514, 600
        %s1516 = scalar_lea.vmem [#allocation11], %s1515
        // Predicated region
        $region57: #{tpu_custom_call.1} parent=39 // pred_check
          %p1517 = pneg %p152
        $region58: #{tpu_custom_call.1} parent=39 // pred_check_branch
          %1519 = sbr.rel (%p1517) target = $region60
        $region59: #{tpu_custom_call.1} parent=39 // pred_region
          %s1521 = ssub.s32 9600, 9600
          %1522 = vsyncadd %s1513, %s1521
          %s1523 = smul.addr %s24, 75
          %s1524 = smul.addr %s1523, 128
          %s1525 = scalar_lea.hbm %s5, %s1524
          %s1526 = sshll.u32 %s1516, 4
          %s1527 = int_to_ptr.vmem [resolvable:$true] %s1526
          %1532 = dma.vmem_to_hbm [thread:$0]  %s1527, 9600, %s1525, %s1513, 128, 128, 8
        $region60: #{tpu_custom_call.1} parent=39 // pred_fallthru
          _
      $region40: #{tpu_custom_call.1} parent=5 // pred_fallthru
        _
      %p1533 = scmp.le.s32.totalorder 2, %s19
      // Predicated region
      $region61: #{tpu_custom_call.1} parent=5 // pred_check
        %p1534 = pneg %p1533
      $region62: #{tpu_custom_call.1} parent=5 // pred_check_branch
        %1536 = sbr.rel (%p1534) target = $region64
      $region63: #{tpu_custom_call.1} parent=5 // pred_region
        %s1537 = ssub.s32 %s19, 2
        // Predicated region
        $region65: #{tpu_custom_call.1} parent=63 // pred_check
          %p1538 = pneg %p158
        $region66: #{tpu_custom_call.1} parent=63 // pred_check_branch
          %1540 = sbr.rel (%p1538) target = $region68
        $region67: #{tpu_custom_call.1} parent=63 // pred_region
          %s1541 = sand.u32 %s143, 1
          %s1542 = scalar_lea.sflag [#allocation5], %s1541
          %s1543 = sand.u32 %s143, 1
          %s1544 = smul.addr %s1543, 600
          %s1545 = scalar_lea.vmem [#allocation11], %s1544
          %1546 = dma.done %s1542, 9600
        $region68: #{tpu_custom_call.1} parent=63 // pred_fallthru
          _
      $region64: #{tpu_custom_call.1} parent=5 // pred_fallthru
        _
    $region6: #{tpu_custom_call.1} parent=1 // loop_footer
      %s23 = sadd.s32 1, %s19
    $region7: #{tpu_custom_call.1} parent=1 // loop_footer_branch
      %18 = sbr.rel target = $region3
    $region8: #{tpu_custom_call.1} parent=1 // loop_exit
      _
    %1547 = vsyncpa [#allocation4], 1
    %s1548 = scalar_lea.sflag [#allocation4], 1
    %1549 = vsyncpa %s1548, 1
    %1550 = vsyncpa [#allocation7], 1
    %1551 = vsyncpa [#allocation10], 1
    %1552 = vsyncpa [#allocation5], 1
    %s1553 = scalar_lea.sflag [#allocation5], 1
    %1554 = vsyncpa %s1553, 1

</llo_original>
